<compile_context>
chip_gen: v5e
topology: v5e:2x2
jax: 0.10.0
libtpu: 0.0.40
codegen_flags: <defaults>
</compile_context>

<pallas_src>
import jax
import jax.numpy as jnp
from jax import lax
from jax.experimental import pallas as pl
from jax.experimental.pallas import tpu as pltpu

POS_DIM = 8
IN_FEATS = 32
HIDDEN = 32          # conv2 re-uses in_feats_dim, so hidden_dim == in_feats_dim as in the PEG benchmark
HP = 128             # hidden's OUTPUT (lane) dim padded to one full lane group

_NT = (((1,), (1,)), ((), ()))   # dot_general dims for  a @ b.T   (contract last dims)
_TT = (((0,), (0,)), ((), ()))   # dot_general dims for  a.T @ b   (contract first dims)


# ----------------------------- fused Pallas kernel -------------------------- #

def _net_kernel(pos_ref, feats_ref, adj_ref,
                w1_ref, b1_ref, w2_ref, b2_ref,
                sel0_ref, sel1_ref,
                scal_ref,
                out_ref):
    """Whole Net.forward in one kernel: conv1 -> conv2 -> pair scorer."""
    pos = pos_ref[...]        # [N, P]
    feats = feats_ref[...]    # [N, F]
    adj = adj_ref[...]        # [N, N]  GCN-normalized adjacency (0 where no edge)
    w1 = w1_ref[...]          # [F,  HP]  lane dim zero-padded past HIDDEN
    b1 = b1_ref[...]          # [1,  HP]
    w2 = w2_ref[...]          # [HIDDEN, HP]  K dim NOT padded, lane dim padded
    b2 = b2_ref[...]          # [1,  HP]
    sel0 = sel0_ref[...]      # [N, M] transposed one-hot selectors for idx[0]
    sel1 = sel1_ref[...]      # [N, M] transposed one-hot selectors for idx[1]

    # scalar params packed in one 1-D SMEM array (scalar path, one tiny transfer)
    ew1 = scal_ref[0]
    eb1 = scal_ref[1]
    ew2 = scal_ref[2]
    eb2 = scal_ref[3]
    fw0 = scal_ref[4]
    fw1 = scal_ref[5]
    fb = scal_ref[6]

    # Pairwise squared distances via the Gram identity (MXU, lane-dense [N, N]);
    # avoids the [N, N, P] broadcast intermediate entirely.  Kept in f32 (cancellation).
    p2 = pos * pos
    sq_col = jnp.sum(p2, axis=-1, keepdims=True)                            # [N, 1]
    ones_row = jnp.ones((1, pos.shape[1]), jnp.float32)
    sq_row = lax.dot_general(ones_row, p2, _NT,
                             preferred_element_type=jnp.float32)            # [1, N]
    gram = lax.dot_general(pos, pos, _NT,
                           preferred_element_type=jnp.float32)              # [N, N]
    dist = jnp.maximum(sq_col + sq_row - 2.0 * gram, 0.0)                   # clamp cancellation

    def edge_pe(ew, eb):
        # edge_mlp = Linear(1,1) + Sigmoid; exp -> EUP, reciprocal -> EUP (approx slot)
        return pl.reciprocal(1.0 + jnp.exp(-(ew * dist + eb)), approx=True)

    # conv1: (A_hat * pe1) @ (feats @ W1) + b1
    h = jnp.dot(feats, w1, preferred_element_type=jnp.float32)              # [N, HP]
    h1 = jnp.dot(adj * edge_pe(ew1, eb1), h,
                 preferred_element_type=jnp.float32) + b1                   # [N, HP]
    # conv2 (feature part of conv1's output; positional part is unchanged).
    # Only the first HIDDEN columns of h1 are meaningful -> K = HIDDEN, not HP.
    h = jnp.dot(h1[:, :HIDDEN], w2, preferred_element_type=jnp.float32)     # [N, HP]
    h2 = jnp.dot(adj * edge_pe(ew2, eb2), h,
                 preferred_element_type=jnp.float32) + b2                   # [N, HP]
    # dist is dead from here on (pos_enc uses gathered positions, not dist rows)

    # Pair scorer: "gather" pair rows with transposed one-hot selector matmuls (MXU),
    # keeping M on the lane axis so the final store is a single lane-major row.
    nfT = lax.dot_general(h2, sel0, _TT, preferred_element_type=jnp.float32)   # [HP, M]
    nsT = lax.dot_general(h2, sel1, _TT, preferred_element_type=jnp.float32)   # [HP, M]
    pred = jnp.sum(nfT * nsT, axis=0, keepdims=True)                           # [1, M]

    p0 = lax.dot_general(pos, sel0, _TT, preferred_element_type=jnp.float32)   # [P, M]
    p1 = lax.dot_general(pos, sel1, _TT, preferred_element_type=jnp.float32)   # [P, M]
    dp = p0 - p1
    pos_enc = jnp.sum(dp * dp, axis=0, keepdims=True)                          # [1, M]

    out_ref[...] = pred * fw0 + pos_enc * fw1 + fb                             # Linear(2, 1)


# ----------------------------- precompute (once per graph / params) --------- #

def build_norm_adj(edge_index, n):
    # GCN normalization with self loops (gcn_norm): A_hat = D^-1/2 (A + I) D^-1/2,
    # A[dst, src] = 1 per directed edge.  Built ONCE, not per forward call.
    src, dst = edge_index[0], edge_index[1]
    a = jnp.zeros((n, n), jnp.float32).at[dst, src].set(1.0)
    a = a.at[jnp.arange(n), jnp.arange(n)].set(1.0)
    deg = jnp.sum(a, axis=1)
    dinv = jax.lax.rsqrt(deg)
    return a * dinv[:, None] * dinv[None, :]


def build_pair_selectors(idx, n):
    # Transposed one-hot selectors [N, M] (M on the lane axis inside the kernel).
    rng = jnp.arange(n)[:, None]
    sel0 = (rng == idx[0][None, :]).astype(jnp.float32)
    sel1 = (rng == idx[1][None, :]).astype(jnp.float32)
    return sel0, sel1


def _pad_cols(a, cols):
    out = jnp.zeros((a.shape[0], cols), a.dtype)
    return out.at[:, : a.shape[1]].set(a)


def prepare_params(params):
    # Pad lane dims to 128 once; pack the 7 scalars into a single f32[8] SMEM array.
    return {
        "w1": _pad_cols(params["w1"], HP),               # [F, HP]
        "b1": _pad_cols(params["b1"], HP),               # [1, HP]
        "w2": _pad_cols(params["w2"], HP),               # [HIDDEN, HP]  (K unpadded)
        "b2": _pad_cols(params["b2"], HP),               # [1, HP]
        "scal": jnp.array(
            [params["ew1"][0, 0], params["eb1"][0, 0],
             params["ew2"][0, 0], params["eb2"][0, 0],
             params["fc_w"][0, 0], params["fc_w"][0, 1],
             params["fc_b"][0, 0], 0.0], jnp.float32),
    }


# ----------------------------- forward wrapper ------------------------------ #

def net_forward(prep, x, adj, sel0, sel1, pos_dim=POS_DIM):
    pos = x[:, :pos_dim]
    feats = x[:, pos_dim:]
    m = sel0.shape[1]

    vmem = pl.BlockSpec(memory_space=pltpu.MemorySpace.VMEM)
    smem = pl.BlockSpec(memory_space=pltpu.MemorySpace.SMEM)

    # Single fused pallas_call: conv1 + conv2 + scorer.  At N=128 the working set
    # (<1 MiB) fits VMEM on every TPU generation; for large N this needs a row-tiled
    # grid ("parallel" node tiles for v7x's 2 TCs, adj/dist streamed per tile) and
    # vmem_limit_bytes tuning for v7x's 64 MiB VMEM.
    out_row = pl.pallas_call(
        _net_kernel,
        out_shape=jax.ShapeDtypeStruct((1, m), jnp.float32),
        in_specs=[vmem] * 9 + [smem],
        out_specs=vmem,
    )(pos, feats, adj, prep["w1"], prep["b1"], prep["w2"], prep["b2"],
      sel0, sel1, prep["scal"])
    return out_row.reshape(m, 1)


# ----------------------------- pure-JAX reference --------------------------- #

def ref_forward(params, x, edge_index, idx, pos_dim=POS_DIM):
    n = x.shape[0]
    adj = build_norm_adj(edge_index, n)
    pos, feats = x[:, :pos_dim], x[:, pos_dim:]

    def conv(f, W, b, ew, eb):
        diff = pos[:, None, :] - pos[None, :, :]
        dist = jnp.sum(diff * diff, axis=-1)
        pe_w = 1.0 / (1.0 + jnp.exp(-(ew[0, 0] * dist + eb[0, 0])))
        return (adj * pe_w) @ (f @ W) + b

    h = conv(feats, params["w1"], params["b1"], params["ew1"], params["eb1"])
    h = conv(h, params["w2"], params["b2"], params["ew2"], params["eb2"])
    x2 = jnp.concatenate([pos, h], axis=1)
    nf = x2[:, pos_dim:][idx[0]]
    ns = x2[:, pos_dim:][idx[1]]
    pf = x2[:, :pos_dim][idx[0]]
    ps = x2[:, :pos_dim][idx[1]]
    pred = jnp.sum(nf * ns, axis=-1, keepdims=True)
    pe = jnp.sum((pf - ps) ** 2, axis=-1, keepdims=True)
    return jnp.concatenate([pred, pe], axis=1) @ params["fc_w"].T + params["fc_b"][0]


# ----------------------------- main ----------------------------------------- #

if __name__ == "__main__":
    key = jax.random.PRNGKey(0)
    keys = jax.random.split(key, 16)
    N, M = 128, 16

    # node features: [pos | feats]
    x = jax.random.normal(keys[0], (N, POS_DIM + IN_FEATS), jnp.float32)

    # deterministic ring + skip graph, both directions, no duplicate edges
    i = jnp.arange(N)
    src = jnp.concatenate([i, (i + 1) % N, i, (i + 2) % N])
    dst = jnp.concatenate([(i + 1) % N, i, (i + 2) % N, i])
    edge_index = jnp.stack([src, dst]).astype(jnp.int32)     # [2, 512]

    # node pairs to score
    idx = jax.random.randint(keys[1], (2, M), 0, N, jnp.int32)

    def init_lin(k, fan_in, shape):
        lim = 1.0 / (fan_in ** 0.5)
        return jax.random.uniform(k, shape, jnp.float32, -lim, lim)

    params = {
        # conv1: weight [F,H], bias [1,H], edge_mlp Linear(1,1)
        "w1": init_lin(keys[2], IN_FEATS, (IN_FEATS, HIDDEN)),
        "b1": init_lin(keys[3], IN_FEATS, (1, HIDDEN)),
        "ew1": init_lin(keys[4], 1, (1, 1)),
        "eb1": init_lin(keys[5], 1, (1, 1)),
        # conv2
        "w2": init_lin(keys[6], HIDDEN, (HIDDEN, HIDDEN)),
        "b2": init_lin(keys[7], HIDDEN, (1, HIDDEN)),
        "ew2": init_lin(keys[8], 1, (1, 1)),
        "eb2": init_lin(keys[9], 1, (1, 1)),
        # final fc = nn.Linear(2, 1) (no_pe=False)
        "fc_w": init_lin(keys[10], 2, (1, 2)),
        "fc_b": init_lin(keys[11], 2, (1, 1)),
    }
    # TODO(synk): BCEWithLogitsLoss (self.loss_fn) is training-only and not part of forward.

    # ---- hoisted per-graph / per-params precompute (NOT in the per-call path) ----
    adj = build_norm_adj(edge_index, N)
    sel0, sel1 = build_pair_selectors(idx, N)
    prep = prepare_params(params)

    fwd = jax.jit(net_forward)
    out = fwd(prep, x, adj, sel0, sel1)
    out = jax.block_until_ready(out)

    ref = ref_forward(params, x, edge_index, idx)
    assert out.shape == (M, 1), out.shape
    # tolerance leaves headroom for the EUP approximate reciprocal used in the
    # in-kernel sigmoid (exact-divide path matched the reference at 2e-4).
    assert jnp.allclose(out, ref, atol=1e-3, rtol=1e-3), (out, ref)

    print("KERNEL_OK")
</pallas_src>

<mosaic_0001>
module attributes {stable_mosaic.version = 11 : i64} {
  func.func @_net_kernel(%arg0: memref<128x8xf32, #tpu.memory_space<vmem>>, %arg1: memref<128x32xf32, #tpu.memory_space<vmem>>, %arg2: memref<128x128xf32, #tpu.memory_space<vmem>>, %arg3: memref<32x128xf32, #tpu.memory_space<vmem>>, %arg4: memref<1x128xf32, #tpu.memory_space<vmem>>, %arg5: memref<32x128xf32, #tpu.memory_space<vmem>>, %arg6: memref<1x128xf32, #tpu.memory_space<vmem>>, %arg7: memref<128x16xf32, #tpu.memory_space<vmem>>, %arg8: memref<128x16xf32, #tpu.memory_space<vmem>>, %arg9: memref<8xf32, #tpu.memory_space<smem>>, %arg10: memref<1x16xf32, #tpu.memory_space<vmem>>) attributes {dimension_semantics = [], scalar_prefetch = 0 : i64, scratch_operands = 0 : i64, tpu.core_type = #tpu.core_type<tc>} {
    %c0 = arith.constant 0 : index
    %c0_0 = arith.constant 0 : index
    %0 = vector.load %arg0[%c0, %c0_0] : memref<128x8xf32, #tpu.memory_space<vmem>>, vector<128x8xf32>
    %c0_1 = arith.constant 0 : index
    %c0_2 = arith.constant 0 : index
    %1 = vector.load %arg1[%c0_1, %c0_2] : memref<128x32xf32, #tpu.memory_space<vmem>>, vector<128x32xf32>
    %c0_3 = arith.constant 0 : index
    %c0_4 = arith.constant 0 : index
    %2 = vector.load %arg2[%c0_3, %c0_4] : memref<128x128xf32, #tpu.memory_space<vmem>>, vector<128x128xf32>
    %c0_5 = arith.constant 0 : index
    %c0_6 = arith.constant 0 : index
    %3 = vector.load %arg3[%c0_5, %c0_6] : memref<32x128xf32, #tpu.memory_space<vmem>>, vector<32x128xf32>
    %c0_7 = arith.constant 0 : index
    %c0_8 = arith.constant 0 : index
    %4 = vector.load %arg4[%c0_7, %c0_8] : memref<1x128xf32, #tpu.memory_space<vmem>>, vector<1x128xf32>
    %c0_9 = arith.constant 0 : index
    %c0_10 = arith.constant 0 : index
    %5 = vector.load %arg5[%c0_9, %c0_10] : memref<32x128xf32, #tpu.memory_space<vmem>>, vector<32x128xf32>
    %c0_11 = arith.constant 0 : index
    %c0_12 = arith.constant 0 : index
    %6 = vector.load %arg6[%c0_11, %c0_12] : memref<1x128xf32, #tpu.memory_space<vmem>>, vector<1x128xf32>
    %c0_13 = arith.constant 0 : index
    %c0_14 = arith.constant 0 : index
    %7 = vector.load %arg7[%c0_13, %c0_14] : memref<128x16xf32, #tpu.memory_space<vmem>>, vector<128x16xf32>
    %c0_15 = arith.constant 0 : index
    %c0_16 = arith.constant 0 : index
    %8 = vector.load %arg8[%c0_15, %c0_16] : memref<128x16xf32, #tpu.memory_space<vmem>>, vector<128x16xf32>
    %c0_17 = arith.constant 0 : index
    %9 = memref.load %arg9[%c0_17] : memref<8xf32, #tpu.memory_space<smem>>
    %c1 = arith.constant 1 : index
    %10 = memref.load %arg9[%c1] : memref<8xf32, #tpu.memory_space<smem>>
    %c2 = arith.constant 2 : index
    %11 = memref.load %arg9[%c2] : memref<8xf32, #tpu.memory_space<smem>>
    %c3 = arith.constant 3 : index
    %12 = memref.load %arg9[%c3] : memref<8xf32, #tpu.memory_space<smem>>
    %c4 = arith.constant 4 : index
    %13 = memref.load %arg9[%c4] : memref<8xf32, #tpu.memory_space<smem>>
    %c5 = arith.constant 5 : index
    %14 = memref.load %arg9[%c5] : memref<8xf32, #tpu.memory_space<smem>>
    %c6 = arith.constant 6 : index
    %15 = memref.load %arg9[%c6] : memref<8xf32, #tpu.memory_space<smem>>
    %16 = arith.mulf %0, %0 : vector<128x8xf32>
    %cst = arith.constant dense<0.000000e+00> : vector<128xf32>
    %17 = vector.multi_reduction <add>, %16, %cst [1] : vector<128x8xf32> to vector<128xf32>
    %18 = vector.shape_cast %17 : vector<128xf32> to vector<128x1xf32>
    %cst_18 = arith.constant 1.000000e+00 : f32
    %19 = vector.broadcast %cst_18 : f32 to vector<1x8xf32>
    %cst_19 = arith.constant dense<0.000000e+00> : vector<1x128xf32>
    %20 = tpu.matmul %19, %16, %cst_19 {dimension_numbers = #tpu.dot_dimension_numbers<[1], [1], [0], [0], [0, 0, 1, 0], [], []>} : vector<1x8xf32>, vector<128x8xf32>, vector<1x128xf32> -> vector<1x128xf32>
    %cst_20 = arith.constant dense<0.000000e+00> : vector<128x128xf32>
    %21 = tpu.matmul %0, %0, %cst_20 {dimension_numbers = #tpu.dot_dimension_numbers<[1], [1], [0], [0], [0, 0, 1, 0], [], []>} : vector<128x8xf32>, vector<128x8xf32>, vector<128x128xf32> -> vector<128x128xf32>
    %22 = vector.broadcast %18 : vector<128x1xf32> to vector<128x128xf32>
    %23 = vector.broadcast %20 : vector<1x128xf32> to vector<128x128xf32>
    %24 = arith.addf %22, %23 : vector<128x128xf32>
    %cst_21 = arith.constant 2.000000e+00 : f32
    %25 = vector.broadcast %cst_21 : f32 to vector<128x128xf32>
    %26 = arith.mulf %25, %21 : vector<128x128xf32>
    %27 = arith.subf %24, %26 : vector<128x128xf32>
    %cst_22 = arith.constant 0.000000e+00 : f32
    %28 = vector.broadcast %cst_22 : f32 to vector<128x128xf32>
    %29 = arith.maximumf %27, %28 : vector<128x128xf32>
    %cst_23 = arith.constant dense<0.000000e+00> : vector<128x128xf32>
    %30 = tpu.matmul %1, %3, %cst_23 {dimension_numbers = #tpu.dot_dimension_numbers<[1], [0], [0], [1], [0, 0, 1, 1], [], []>} : vector<128x32xf32>, vector<32x128xf32>, vector<128x128xf32> -> vector<128x128xf32>
    %31 = vector.broadcast %9 : f32 to vector<128x128xf32>
    %32 = arith.mulf %31, %29 : vector<128x128xf32>
    %33 = vector.broadcast %10 : f32 to vector<128x128xf32>
    %34 = arith.addf %32, %33 : vector<128x128xf32>
    %cst_24 = arith.constant 0.000000e+00 : f32
    %35 = vector.broadcast %cst_24 : f32 to vector<128x128xf32>
    %36 = arith.subf %35, %34 : vector<128x128xf32>
    %37 = math.exp %36 : vector<128x128xf32>
    %cst_25 = arith.constant 1.000000e+00 : f32
    %38 = vector.broadcast %cst_25 : f32 to vector<128x128xf32>
    %39 = arith.addf %38, %37 : vector<128x128xf32>
    %40 = tpu.reciprocal %39 {approx = true} : vector<128x128xf32> -> vector<128x128xf32>
    %41 = arith.mulf %2, %40 : vector<128x128xf32>
    %cst_26 = arith.constant dense<0.000000e+00> : vector<128x128xf32>
    %42 = tpu.matmul %41, %30, %cst_26 {dimension_numbers = #tpu.dot_dimension_numbers<[1], [0], [0], [1], [0, 0, 1, 1], [], []>} : vector<128x128xf32>, vector<128x128xf32>, vector<128x128xf32> -> vector<128x128xf32>
    %43 = vector.broadcast %4 : vector<1x128xf32> to vector<128x128xf32>
    %44 = arith.addf %42, %43 : vector<128x128xf32>
    %45 = vector.extract_strided_slice %44 {offsets = [0, 0], sizes = [128, 32], strides = [1, 1]} : vector<128x128xf32> to vector<128x32xf32>
    %cst_27 = arith.constant dense<0.000000e+00> : vector<128x128xf32>
    %46 = tpu.matmul %45, %5, %cst_27 {dimension_numbers = #tpu.dot_dimension_numbers<[1], [0], [0], [1], [0, 0, 1, 1], [], []>} : vector<128x32xf32>, vector<32x128xf32>, vector<128x128xf32> -> vector<128x128xf32>
    %47 = vector.broadcast %11 : f32 to vector<128x128xf32>
    %48 = arith.mulf %47, %29 : vector<128x128xf32>
    %49 = vector.broadcast %12 : f32 to vector<128x128xf32>
    %50 = arith.addf %48, %49 : vector<128x128xf32>
    %cst_28 = arith.constant 0.000000e+00 : f32
    %51 = vector.broadcast %cst_28 : f32 to vector<128x128xf32>
    %52 = arith.subf %51, %50 : vector<128x128xf32>
    %53 = math.exp %52 : vector<128x128xf32>
    %cst_29 = arith.constant 1.000000e+00 : f32
    %54 = vector.broadcast %cst_29 : f32 to vector<128x128xf32>
    %55 = arith.addf %54, %53 : vector<128x128xf32>
    %56 = tpu.reciprocal %55 {approx = true} : vector<128x128xf32> -> vector<128x128xf32>
    %57 = arith.mulf %2, %56 : vector<128x128xf32>
    %cst_30 = arith.constant dense<0.000000e+00> : vector<128x128xf32>
    %58 = tpu.matmul %57, %46, %cst_30 {dimension_numbers = #tpu.dot_dimension_numbers<[1], [0], [0], [1], [0, 0, 1, 1], [], []>} : vector<128x128xf32>, vector<128x128xf32>, vector<128x128xf32> -> vector<128x128xf32>
    %59 = vector.broadcast %6 : vector<1x128xf32> to vector<128x128xf32>
    %60 = arith.addf %58, %59 : vector<128x128xf32>
    %cst_31 = arith.constant dense<0.000000e+00> : vector<128x16xf32>
    %61 = tpu.matmul %60, %7, %cst_31 {dimension_numbers = #tpu.dot_dimension_numbers<[0], [0], [1], [1], [0, 1, 1, 1], [], []>} : vector<128x128xf32>, vector<128x16xf32>, vector<128x16xf32> -> vector<128x16xf32>
    %cst_32 = arith.constant dense<0.000000e+00> : vector<128x16xf32>
    %62 = tpu.matmul %60, %8, %cst_32 {dimension_numbers = #tpu.dot_dimension_numbers<[0], [0], [1], [1], [0, 1, 1, 1], [], []>} : vector<128x128xf32>, vector<128x16xf32>, vector<128x16xf32> -> vector<128x16xf32>
    %63 = arith.mulf %61, %62 : vector<128x16xf32>
    %cst_33 = arith.constant dense<0.000000e+00> : vector<16xf32>
    %64 = vector.multi_reduction <add>, %63, %cst_33 [0] : vector<128x16xf32> to vector<16xf32>
    %65 = vector.shape_cast %64 : vector<16xf32> to vector<1x16xf32>
    %cst_34 = arith.constant dense<0.000000e+00> : vector<8x16xf32>
    %66 = tpu.matmul %0, %7, %cst_34 {dimension_numbers = #tpu.dot_dimension_numbers<[0], [0], [1], [1], [0, 1, 1, 1], [], []>} : vector<128x8xf32>, vector<128x16xf32>, vector<8x16xf32> -> vector<8x16xf32>
    %cst_35 = arith.constant dense<0.000000e+00> : vector<8x16xf32>
    %67 = tpu.matmul %0, %8, %cst_35 {dimension_numbers = #tpu.dot_dimension_numbers<[0], [0], [1], [1], [0, 1, 1, 1], [], []>} : vector<128x8xf32>, vector<128x16xf32>, vector<8x16xf32> -> vector<8x16xf32>
    %68 = arith.subf %66, %67 : vector<8x16xf32>
    %69 = arith.mulf %68, %68 : vector<8x16xf32>
    %cst_36 = arith.constant dense<0.000000e+00> : vector<16xf32>
    %70 = vector.multi_reduction <add>, %69, %cst_36 [0] : vector<8x16xf32> to vector<16xf32>
    %71 = vector.shape_cast %70 : vector<16xf32> to vector<1x16xf32>
    %72 = vector.broadcast %13 : f32 to vector<1x16xf32>
    %73 = arith.mulf %65, %72 : vector<1x16xf32>
    %74 = vector.broadcast %14 : f32 to vector<1x16xf32>
    %75 = arith.mulf %71, %74 : vector<1x16xf32>
    %76 = arith.addf %73, %75 : vector<1x16xf32>
    %77 = vector.broadcast %15 : f32 to vector<1x16xf32>
    %78 = arith.addf %76, %77 : vector<1x16xf32>
    %c0_37 = arith.constant 0 : index
    %c0_38 = arith.constant 0 : index
    %79 = vector.load %arg10[%c0_37, %c0_38] : memref<1x16xf32, #tpu.memory_space<vmem>>, vector<1x16xf32>
    tpu.vector_store %arg10[%c0_37, %c0_38], %78 {strides = array<i32>} : memref<1x16xf32, #tpu.memory_space<vmem>>, vector<1x16xf32>,
    return
  }
}

</mosaic_0001>

<llo_original>
// kernel: net_forward.1
$region0: #{net_forward.1}
  #allocation0 [shape = 'u32[]', space=smem, size = 0x4, offset = 0x4, fixed_abs, tag = 'smem constant byte address 0x4 - core index']
  #allocation1 [shape = 'u32[72,128]{1,0:T(1,128)}', space=vmem, size = 0x9000, scoped, tag = 'internal scratch']
  %s0 = inlined_call_operand.vmem [shape: f32[128,8], index: 0, kind: input, shape index: {}]
  %s1 = inlined_call_operand.vmem [shape: f32[128,32], index: 1, kind: input, shape index: {}]
  %s2 = inlined_call_operand.vmem [shape: f32[128,128], index: 2, kind: input, shape index: {}]
  %s3 = inlined_call_operand.vmem [shape: f32[32,128], index: 3, kind: input, shape index: {}]
  %s4 = inlined_call_operand.vmem [shape: f32[1,128], index: 4, kind: input, shape index: {}]
  %s5 = inlined_call_operand.vmem [shape: f32[32,128], index: 5, kind: input, shape index: {}]
  %s6 = inlined_call_operand.vmem [shape: f32[1,128], index: 6, kind: input, shape index: {}]
  %s7 = inlined_call_operand.vmem [shape: f32[128,16], index: 7, kind: input, shape index: {}]
  %s8 = inlined_call_operand.vmem [shape: f32[128,16], index: 8, kind: input, shape index: {}]
  %s9 = inlined_call_operand.vmem [shape: f32[8], index: 9, kind: input, shape index: {}]
  %s10 = inlined_call_operand.hbm [shape: f32[1,16], index: 10, kind: output, shape index: {}]
  %s11 = sld [smem:[#allocation0]]
  $region54: #{net_forward.1} parent=0
    _
  %s13 = ssub.s32 1, %s11
  %s14 = scalar_select 0, %s13, %s11
  $region1: #{net_forward.1} parent=0
    #allocation2 [shape = 'u8[512]{0}', space=smem, size = 0x200, scoped, tag = 'input window, operand 9, single buffered']
    #allocation3 [shape = 's32[1]{0}', space=sflag, size = 0x4, scoped, tag = 'scoped memory for net_forward.1']
    #allocation4 [shape = 's32[1]{0}', space=sflag, size = 0x4, scoped, tag = 'scoped memory for net_forward.1']
    #allocation5 [shape = 'u8[512]{0}', space=vmem, size = 0x400, scoped, tag = 'output window, operand 0, single buffered']
    %15 = vsyncpa [#allocation4], 0
    %16 = vsyncpa [#allocation3], 0
    // Predicated region
    $region2: #{net_forward.1} parent=1 // pred_check
      _
    $region3: #{net_forward.1} parent=1 // pred_check_branch
      %18 = sbr.rel (0) target = $region5
    $region4: #{net_forward.1} parent=1 // pred_region
      _
    $region5: #{net_forward.1} parent=1 // pred_fallthru
      _
    // Predicated region
    $region6: #{net_forward.1} parent=1 // pred_check
      _
    $region7: #{net_forward.1} parent=1 // pred_check_branch
      %20 = sbr.rel (0) target = $region9
    $region8: #{net_forward.1} parent=1 // pred_region
      _
    $region9: #{net_forward.1} parent=1 // pred_fallthru
      _
    // Predicated region
    $region10: #{net_forward.1} parent=1 // pred_check
      _
    $region11: #{net_forward.1} parent=1 // pred_check_branch
      %22 = sbr.rel (0) target = $region13
    $region12: #{net_forward.1} parent=1 // pred_region
      _
    $region13: #{net_forward.1} parent=1 // pred_fallthru
      _
    // Predicated region
    $region14: #{net_forward.1} parent=1 // pred_check
      _
    $region15: #{net_forward.1} parent=1 // pred_check_branch
      %24 = sbr.rel (0) target = $region17
    $region16: #{net_forward.1} parent=1 // pred_region
      _
    $region17: #{net_forward.1} parent=1 // pred_fallthru
      _
    // Predicated region
    $region18: #{net_forward.1} parent=1 // pred_check
      _
    $region19: #{net_forward.1} parent=1 // pred_check_branch
      %26 = sbr.rel (0) target = $region21
    $region20: #{net_forward.1} parent=1 // pred_region
      _
    $region21: #{net_forward.1} parent=1 // pred_fallthru
      _
    // Predicated region
    $region22: #{net_forward.1} parent=1 // pred_check
      _
    $region23: #{net_forward.1} parent=1 // pred_check_branch
      %28 = sbr.rel (0) target = $region25
    $region24: #{net_forward.1} parent=1 // pred_region
      _
    $region25: #{net_forward.1} parent=1 // pred_fallthru
      _
    // Predicated region
    $region26: #{net_forward.1} parent=1 // pred_check
      _
    $region27: #{net_forward.1} parent=1 // pred_check_branch
      %30 = sbr.rel (0) target = $region29
    $region28: #{net_forward.1} parent=1 // pred_region
      _
    $region29: #{net_forward.1} parent=1 // pred_fallthru
      _
    // Predicated region
    $region30: #{net_forward.1} parent=1 // pred_check
      _
    $region31: #{net_forward.1} parent=1 // pred_check_branch
      %32 = sbr.rel (0) target = $region33
    $region32: #{net_forward.1} parent=1 // pred_region
      _
    $region33: #{net_forward.1} parent=1 // pred_fallthru
      _
    // Predicated region
    $region34: #{net_forward.1} parent=1 // pred_check
      _
    $region35: #{net_forward.1} parent=1 // pred_check_branch
      %34 = sbr.rel (0) target = $region37
    $region36: #{net_forward.1} parent=1 // pred_region
      _
    $region37: #{net_forward.1} parent=1 // pred_fallthru
      _
    // Predicated region
    $region38: #{net_forward.1} parent=1 // pred_check
      _
    $region39: #{net_forward.1} parent=1 // pred_check_branch
      %36 = sbr.rel (0) target = $region41
    $region40: #{net_forward.1} parent=1 // pred_region
      %38 = vsyncadd [#allocation4], 0
      %s40 = sshll.u32 %s9, 4
      %s41 = int_to_ptr.vmem [resolvable:$true] %s40
      %43 = dma.vmem_to_smem %s41, 16, [#allocation2], [#allocation4]
    $region41: #{net_forward.1} parent=1 // pred_fallthru
      _
    // Predicated region
    $region42: #{net_forward.1} parent=1 // pred_check
      _
    $region43: #{net_forward.1} parent=1 // pred_check_branch
      %45 = sbr.rel (0) target = $region45
    $region44: #{net_forward.1} parent=1 // pred_region
      %47 = dma.done [#allocation4], 16
    $region45: #{net_forward.1} parent=1 // pred_fallthru
      _
    %48 = sfence
    %v49 = vld [vmem:[%s0] sm:$0xff]
    %v50 = vld [vmem:[%s0 + $0x8] sm:$0xff]
    %v51 = vld [vmem:[%s0 + $0x10] sm:$0xff]
    %v52 = vld [vmem:[%s0 + $0x18] sm:$0xff]
    %v53 = vld [vmem:[%s0 + $0x20] sm:$0xff]
    %v54 = vld [vmem:[%s0 + $0x28] sm:$0xff]
    %v55 = vld [vmem:[%s0 + $0x30] sm:$0xff]
    %v56 = vld [vmem:[%s0 + $0x38] sm:$0xff]
    %v57 = vld [vmem:[%s0 + $0x40] sm:$0xff]
    %v58 = vld [vmem:[%s0 + $0x48] sm:$0xff]
    %v59 = vld [vmem:[%s0 + $0x50] sm:$0xff]
    %v60 = vld [vmem:[%s0 + $0x58] sm:$0xff]
    %v61 = vld [vmem:[%s0 + $0x60] sm:$0xff]
    %v62 = vld [vmem:[%s0 + $0x68] sm:$0xff]
    %v63 = vld [vmem:[%s0 + $0x70] sm:$0xff]
    %v64 = vld [vmem:[%s0 + $0x78] sm:$0xff]
    %v65 = vld [vmem:[%s1] sm:$0xff]
    %v66 = vld [vmem:[%s1 + $0x8] sm:$0xff]
    %v67 = vld [vmem:[%s1 + $0x10] sm:$0xff]
    %v68 = vld [vmem:[%s1 + $0x18] sm:$0xff]
    %v69 = vld [vmem:[%s1 + $0x20] sm:$0xff]
    %v70 = vld [vmem:[%s1 + $0x28] sm:$0xff]
    %v71 = vld [vmem:[%s1 + $0x30] sm:$0xff]
    %v72 = vld [vmem:[%s1 + $0x38] sm:$0xff]
    %v73 = vld [vmem:[%s1 + $0x40] sm:$0xff]
    %v74 = vld [vmem:[%s1 + $0x48] sm:$0xff]
    %v75 = vld [vmem:[%s1 + $0x50] sm:$0xff]
    %v76 = vld [vmem:[%s1 + $0x58] sm:$0xff]
    %v77 = vld [vmem:[%s1 + $0x60] sm:$0xff]
    %v78 = vld [vmem:[%s1 + $0x68] sm:$0xff]
    %v79 = vld [vmem:[%s1 + $0x70] sm:$0xff]
    %v80 = vld [vmem:[%s1 + $0x78] sm:$0xff]
    %v81 = vld [vmem:[%s2] sm:$0xff]
    %v82 = vld [vmem:[%s2 + $0x8] sm:$0xff]
    %v83 = vld [vmem:[%s2 + $0x10] sm:$0xff]
    %v84 = vld [vmem:[%s2 + $0x18] sm:$0xff]
    %v85 = vld [vmem:[%s2 + $0x20] sm:$0xff]
    %v86 = vld [vmem:[%s2 + $0x28] sm:$0xff]
    %v87 = vld [vmem:[%s2 + $0x30] sm:$0xff]
    %v88 = vld [vmem:[%s2 + $0x38] sm:$0xff]
    %v89 = vld [vmem:[%s2 + $0x40] sm:$0xff]
    %v90 = vld [vmem:[%s2 + $0x48] sm:$0xff]
    %v91 = vld [vmem:[%s2 + $0x50] sm:$0xff]
    %v92 = vld [vmem:[%s2 + $0x58] sm:$0xff]
    %v93 = vld [vmem:[%s2 + $0x60] sm:$0xff]
    %v94 = vld [vmem:[%s2 + $0x68] sm:$0xff]
    %v95 = vld [vmem:[%s2 + $0x70] sm:$0xff]
    %v96 = vld [vmem:[%s2 + $0x78] sm:$0xff]
    %v97 = vld [vmem:[%s3] sm:$0xff]
    %v98 = vld [vmem:[%s3 + $0x8] sm:$0xff]
    %v99 = vld [vmem:[%s3 + $0x10] sm:$0xff]
    %v100 = vld [vmem:[%s3 + $0x18] sm:$0xff]
    %v101 = vld [vmem:[%s4] sm:$0x1]
    %v102 = vld [vmem:[%s5] sm:$0xff]
    %v103 = vld [vmem:[%s5 + $0x8] sm:$0xff]
    %v104 = vld [vmem:[%s5 + $0x10] sm:$0xff]
    %v105 = vld [vmem:[%s5 + $0x18] sm:$0xff]
    %v106 = vld [vmem:[%s6] sm:$0x1]
    %v107 = vld [vmem:[%s7] sm:$0xff]
    %v108 = vld [vmem:[%s7 + $0x8] sm:$0xff]
    %v109 = vld [vmem:[%s7 + $0x10] sm:$0xff]
    %v110 = vld [vmem:[%s7 + $0x18] sm:$0xff]
    %v111 = vld [vmem:[%s7 + $0x20] sm:$0xff]
    %v112 = vld [vmem:[%s7 + $0x28] sm:$0xff]
    %v113 = vld [vmem:[%s7 + $0x30] sm:$0xff]
    %v114 = vld [vmem:[%s7 + $0x38] sm:$0xff]
    %v115 = vld [vmem:[%s7 + $0x40] sm:$0xff]
    %v116 = vld [vmem:[%s7 + $0x48] sm:$0xff]
    %v117 = vld [vmem:[%s7 + $0x50] sm:$0xff]
    %v118 = vld [vmem:[%s7 + $0x58] sm:$0xff]
    %v119 = vld [vmem:[%s7 + $0x60] sm:$0xff]
    %v120 = vld [vmem:[%s7 + $0x68] sm:$0xff]
    %v121 = vld [vmem:[%s7 + $0x70] sm:$0xff]
    %v122 = vld [vmem:[%s7 + $0x78] sm:$0xff]
    %v123 = vld [vmem:[%s8] sm:$0xff]
    %v124 = vld [vmem:[%s8 + $0x8] sm:$0xff]
    %v125 = vld [vmem:[%s8 + $0x10] sm:$0xff]
    %v126 = vld [vmem:[%s8 + $0x18] sm:$0xff]
    %v127 = vld [vmem:[%s8 + $0x20] sm:$0xff]
    %v128 = vld [vmem:[%s8 + $0x28] sm:$0xff]
    %v129 = vld [vmem:[%s8 + $0x30] sm:$0xff]
    %v130 = vld [vmem:[%s8 + $0x38] sm:$0xff]
    %v131 = vld [vmem:[%s8 + $0x40] sm:$0xff]
    %v132 = vld [vmem:[%s8 + $0x48] sm:$0xff]
    %v133 = vld [vmem:[%s8 + $0x50] sm:$0xff]
    %v134 = vld [vmem:[%s8 + $0x58] sm:$0xff]
    %v135 = vld [vmem:[%s8 + $0x60] sm:$0xff]
    %v136 = vld [vmem:[%s8 + $0x68] sm:$0xff]
    %v137 = vld [vmem:[%s8 + $0x70] sm:$0xff]
    %v138 = vld [vmem:[%s8 + $0x78] sm:$0xff]
    %s139 = sld [smem:[#allocation2]]
    %s140 = sld [smem:[#allocation2 + $0x1]]
    %s141 = sld [smem:[#allocation2 + $0x2]]
    %s142 = sld [smem:[#allocation2 + $0x3]]
    %s143 = sld [smem:[#allocation2 + $0x4]]
    %s144 = sld [smem:[#allocation2 + $0x5]]
    %s145 = sld [smem:[#allocation2 + $0x6]]
    %v146 = vmul.f32 %v49, %v49
    %v147 = vmul.f32 %v50, %v50
    %v148 = vmul.f32 %v51, %v51
    %v149 = vmul.f32 %v52, %v52
    %v150 = vmul.f32 %v53, %v53
    %v151 = vmul.f32 %v54, %v54
    %v152 = vmul.f32 %v55, %v55
    %v153 = vmul.f32 %v56, %v56
    %v154 = vmul.f32 %v57, %v57
    %v155 = vmul.f32 %v58, %v58
    %v156 = vmul.f32 %v59, %v59
    %v157 = vmul.f32 %v60, %v60
    %v158 = vmul.f32 %v61, %v61
    %v159 = vmul.f32 %v62, %v62
    %v160 = vmul.f32 %v63, %v63
    %v161 = vmul.f32 %v64, %v64
    %vm162 = vcmask 64512
    %v163 = vsel %vm162, %v146, 0.0
    %164 = vadd.xlane.f32.xlu0 %v163
    %v165 = vpop.xlane.xlu0 %164
    %v166 = vsel %vm162, %v147, 0.0
    %167 = vadd.xlane.f32.xlu0 %v166
    %v168 = vpop.xlane.xlu0 %167
    %v169 = vsel %vm162, %v148, 0.0
    %170 = vadd.xlane.f32.xlu0 %v169
    %v171 = vpop.xlane.xlu0 %170
    %v172 = vsel %vm162, %v149, 0.0
    %173 = vadd.xlane.f32.xlu0 %v172
    %v174 = vpop.xlane.xlu0 %173
    %v175 = vsel %vm162, %v150, 0.0
    %176 = vadd.xlane.f32.xlu0 %v175
    %v177 = vpop.xlane.xlu0 %176
    %v178 = vsel %vm162, %v151, 0.0
    %179 = vadd.xlane.f32.xlu0 %v178
    %v180 = vpop.xlane.xlu0 %179
    %v181 = vsel %vm162, %v152, 0.0
    %182 = vadd.xlane.f32.xlu0 %v181
    %v183 = vpop.xlane.xlu0 %182
    %v184 = vsel %vm162, %v153, 0.0
    %185 = vadd.xlane.f32.xlu0 %v184
    %v186 = vpop.xlane.xlu0 %185
    %v187 = vsel %vm162, %v154, 0.0
    %188 = vadd.xlane.f32.xlu0 %v187
    %v189 = vpop.xlane.xlu0 %188
    %v190 = vsel %vm162, %v155, 0.0
    %191 = vadd.xlane.f32.xlu0 %v190
    %v192 = vpop.xlane.xlu0 %191
    %v193 = vsel %vm162, %v156, 0.0
    %194 = vadd.xlane.f32.xlu0 %v193
    %v195 = vpop.xlane.xlu0 %194
    %v196 = vsel %vm162, %v157, 0.0
    %197 = vadd.xlane.f32.xlu0 %v196
    %v198 = vpop.xlane.xlu0 %197
    %v199 = vsel %vm162, %v158, 0.0
    %200 = vadd.xlane.f32.xlu0 %v199
    %v201 = vpop.xlane.xlu0 %200
    %v202 = vsel %vm162, %v159, 0.0
    %203 = vadd.xlane.f32.xlu0 %v202
    %v204 = vpop.xlane.xlu0 %203
    %v205 = vsel %vm162, %v160, 0.0
    %206 = vadd.xlane.f32.xlu0 %v205
    %v207 = vpop.xlane.xlu0 %206
    %v208 = vsel %vm162, %v161, 0.0
    %209 = vadd.xlane.f32.xlu0 %v208
    %v210 = vpop.xlane.xlu0 %209
    %v212 = vsel %vm162, 1.0, 0
    %v215 = vsel %vm162, %v146, 0
    %v218 = vsel %vm162, %v147, 0
    %v221 = vsel %vm162, %v148, 0
    %v224 = vsel %vm162, %v149, 0
    %v227 = vsel %vm162, %v150, 0
    %v230 = vsel %vm162, %v151, 0
    %v233 = vsel %vm162, %v152, 0
    %v236 = vsel %vm162, %v153, 0
    %v239 = vsel %vm162, %v154, 0
    %v242 = vsel %vm162, %v155, 0
    %v245 = vsel %vm162, %v156, 0
    %v248 = vsel %vm162, %v157, 0
    %v251 = vsel %vm162, %v158, 0
    %v254 = vsel %vm162, %v159, 0
    %v257 = vsel %vm162, %v160, 0
    %v260 = vsel %vm162, %v161, 0
    %262 = vmatpush.xpose.msra.mxu0 %v260
    %263 = vmatpush.xpose.msra.mxu0 %v257
    %264 = vmatpush.xpose.msra.mxu0 %v254
    %265 = vmatpush.xpose.msra.mxu0 %v251
    %266 = vmatpush.xpose.msra.mxu0 %v248
    %267 = vmatpush.xpose.msra.mxu0 %v245
    %268 = vmatpush.xpose.msra.mxu0 %v242
    %269 = vmatpush.xpose.msra.mxu0 %v239
    %270 = vmatpush.xpose.msra.mxu0 %v236
    %271 = vmatpush.xpose.msra.mxu0 %v233
    %272 = vmatpush.xpose.msra.mxu0 %v230
    %273 = vmatpush.xpose.msra.mxu0 %v227
    %274 = vmatpush.xpose.msra.mxu0 %v224
    %275 = vmatpush.xpose.msra.mxu0 %v221
    %276 = vmatpush.xpose.msra.mxu0 %v218
    %277 = vmatpush.xpose.msra.mxu0 %v215
    %278 = vmatmul.f32.gmra.mxu0 %v212
    %v279 = vpop.f32.mrf.mxu0
    %v280 = vadd.f32 0.0, %v279
    %281 = vdwg.mxu0
    %v283 = vsel %vm162, %v49, 0
    %v286 = vsel %vm162, %v50, 0
    %v289 = vsel %vm162, %v51, 0
    %v292 = vsel %vm162, %v52, 0
    %v295 = vsel %vm162, %v53, 0
    %v298 = vsel %vm162, %v54, 0
    %v301 = vsel %vm162, %v55, 0
    %v304 = vsel %vm162, %v56, 0
    %v307 = vsel %vm162, %v57, 0
    %v310 = vsel %vm162, %v58, 0
    %v313 = vsel %vm162, %v59, 0
    %v316 = vsel %vm162, %v60, 0
    %v319 = vsel %vm162, %v61, 0
    %v322 = vsel %vm162, %v62, 0
    %v325 = vsel %vm162, %v63, 0
    %v328 = vsel %vm162, %v64, 0
    %330 = vmatpush.xpose.msra.mxu0 %v328
    %331 = vmatpush.xpose.msra.mxu0 %v325
    %332 = vmatpush.xpose.msra.mxu0 %v322
    %333 = vmatpush.xpose.msra.mxu0 %v319
    %334 = vmatpush.xpose.msra.mxu0 %v316
    %335 = vmatpush.xpose.msra.mxu0 %v313
    %336 = vmatpush.xpose.msra.mxu0 %v310
    %337 = vmatpush.xpose.msra.mxu0 %v307
    %338 = vmatpush.xpose.msra.mxu0 %v304
    %339 = vmatpush.xpose.msra.mxu0 %v301
    %340 = vmatpush.xpose.msra.mxu0 %v298
    %341 = vmatpush.xpose.msra.mxu0 %v295
    %342 = vmatpush.xpose.msra.mxu0 %v292
    %343 = vmatpush.xpose.msra.mxu0 %v289
    %344 = vmatpush.xpose.msra.mxu0 %v286
    %345 = vmatpush.xpose.msra.mxu0 %v283
    %346 = vmatmul.f32.gmra.mxu0 %v283
    %v347 = vpop.f32.mrf.mxu0
    %v348 = vadd.f32 0.0, %v347
    %349 = vmatmul.f32.gmra.mxu0 %v286
    %v350 = vpop.f32.mrf.mxu0
    %v351 = vadd.f32 0.0, %v350
    %352 = vmatmul.f32.gmra.mxu0 %v289
    %v353 = vpop.f32.mrf.mxu0
    %v354 = vadd.f32 0.0, %v353
    %355 = vmatmul.f32.gmra.mxu0 %v292
    %v356 = vpop.f32.mrf.mxu0
    %v357 = vadd.f32 0.0, %v356
    %358 = vmatmul.f32.gmra.mxu0 %v295
    %v359 = vpop.f32.mrf.mxu0
    %v360 = vadd.f32 0.0, %v359
    %361 = vmatmul.f32.gmra.mxu0 %v298
    %v362 = vpop.f32.mrf.mxu0
    %v363 = vadd.f32 0.0, %v362
    %364 = vmatmul.f32.gmra.mxu0 %v301
    %v365 = vpop.f32.mrf.mxu0
    %v366 = vadd.f32 0.0, %v365
    %367 = vmatmul.f32.gmra.mxu0 %v304
    %v368 = vpop.f32.mrf.mxu0
    %v369 = vadd.f32 0.0, %v368
    %370 = vmatmul.f32.gmra.mxu0 %v307
    %v371 = vpop.f32.mrf.mxu0
    %v372 = vadd.f32 0.0, %v371
    %373 = vmatmul.f32.gmra.mxu0 %v310
    %v374 = vpop.f32.mrf.mxu0
    %v375 = vadd.f32 0.0, %v374
    %376 = vmatmul.f32.gmra.mxu0 %v313
    %v377 = vpop.f32.mrf.mxu0
    %v378 = vadd.f32 0.0, %v377
    %379 = vmatmul.f32.gmra.mxu0 %v316
    %v380 = vpop.f32.mrf.mxu0
    %v381 = vadd.f32 0.0, %v380
    %382 = vmatmul.f32.gmra.mxu0 %v319
    %v383 = vpop.f32.mrf.mxu0
    %v384 = vadd.f32 0.0, %v383
    %385 = vmatmul.f32.gmra.mxu0 %v322
    %v386 = vpop.f32.mrf.mxu0
    %v387 = vadd.f32 0.0, %v386
    %388 = vmatmul.f32.gmra.mxu0 %v325
    %v389 = vpop.f32.mrf.mxu0
    %v390 = vadd.f32 0.0, %v389
    %391 = vmatmul.f32.gmra.mxu0 %v328
    %v392 = vpop.f32.mrf.mxu0
    %v393 = vadd.f32 0.0, %v392
    %394 = vdwg.mxu0
    %v395 = vperm.slane %v280, 0
    %v396 = vadd.f32 %v165, %v395
    %v397 = vadd.f32 %v168, %v395
    %v398 = vadd.f32 %v171, %v395
    %v399 = vadd.f32 %v174, %v395
    %v400 = vadd.f32 %v177, %v395
    %v401 = vadd.f32 %v180, %v395
    %v402 = vadd.f32 %v183, %v395
    %v403 = vadd.f32 %v186, %v395
    %v404 = vadd.f32 %v189, %v395
    %v405 = vadd.f32 %v192, %v395
    %v406 = vadd.f32 %v195, %v395
    %v407 = vadd.f32 %v198, %v395
    %v408 = vadd.f32 %v201, %v395
    %v409 = vadd.f32 %v204, %v395
    %v410 = vadd.f32 %v207, %v395
    %v411 = vadd.f32 %v210, %v395
    %v412 = vmul.f32 %v348, 2.0
    %v413 = vmul.f32 %v351, 2.0
    %v414 = vmul.f32 %v354, 2.0
    %v415 = vmul.f32 %v357, 2.0
    %v416 = vmul.f32 %v360, 2.0
    %v417 = vmul.f32 %v363, 2.0
    %v418 = vmul.f32 %v366, 2.0
    %v419 = vmul.f32 %v369, 2.0
    %v420 = vmul.f32 %v372, 2.0
    %v421 = vmul.f32 %v375, 2.0
    %v422 = vmul.f32 %v378, 2.0
    %v423 = vmul.f32 %v381, 2.0
    %v424 = vmul.f32 %v384, 2.0
    %v425 = vmul.f32 %v387, 2.0
    %v426 = vmul.f32 %v390, 2.0
    %v427 = vmul.f32 %v393, 2.0
    %v428 = vsub.f32 %v396, %v412
    %v429 = vsub.f32 %v397, %v413
    %v430 = vsub.f32 %v398, %v414
    %v431 = vsub.f32 %v399, %v415
    %v432 = vsub.f32 %v400, %v416
    %v433 = vsub.f32 %v401, %v417
    %v434 = vsub.f32 %v402, %v418
    %v435 = vsub.f32 %v403, %v419
    %v436 = vsub.f32 %v404, %v420
    %v437 = vsub.f32 %v405, %v421
    %v438 = vsub.f32 %v406, %v422
    %v439 = vsub.f32 %v407, %v423
    %v440 = vsub.f32 %v408, %v424
    %v441 = vsub.f32 %v409, %v425
    %v442 = vsub.f32 %v410, %v426
    %v443 = vsub.f32 %v411, %v427
    %v444 = vmax.f32 %v428, 0.0
    %v445 = vmax.f32 %v429, 0.0
    %v446 = vmax.f32 %v430, 0.0
    %v447 = vmax.f32 %v431, 0.0
    %v448 = vmax.f32 %v432, 0.0
    %v449 = vmax.f32 %v433, 0.0
    %v450 = vmax.f32 %v434, 0.0
    %v451 = vmax.f32 %v435, 0.0
    %v452 = vmax.f32 %v436, 0.0
    %v453 = vmax.f32 %v437, 0.0
    %v454 = vmax.f32 %v438, 0.0
    %v455 = vmax.f32 %v439, 0.0
    %v456 = vmax.f32 %v440, 0.0
    %v457 = vmax.f32 %v441, 0.0
    %v458 = vmax.f32 %v442, 0.0
    %v459 = vmax.f32 %v443, 0.0
    %vm460 = vcmask 261120
    %v462 = vsel %vm460, %v65, 0
    %v465 = vsel %vm460, %v66, 0
    %v468 = vsel %vm460, %v67, 0
    %v471 = vsel %vm460, %v68, 0
    %v474 = vsel %vm460, %v69, 0
    %v477 = vsel %vm460, %v70, 0
    %v480 = vsel %vm460, %v71, 0
    %v483 = vsel %vm460, %v72, 0
    %v486 = vsel %vm460, %v73, 0
    %v489 = vsel %vm460, %v74, 0
    %v492 = vsel %vm460, %v75, 0
    %v495 = vsel %vm460, %v76, 0
    %v498 = vsel %vm460, %v77, 0
    %v501 = vsel %vm460, %v78, 0
    %v504 = vsel %vm460, %v79, 0
    %v507 = vsel %vm460, %v80, 0
    %509 = vmatpush.msra.mxu0 0.0
    %510 = vmatpush.msra.mxu0 0.0
    %511 = vmatpush.msra.mxu0 0.0
    %512 = vmatpush.msra.mxu0 0.0
    %513 = vmatpush.msra.mxu0 0.0
    %514 = vmatpush.msra.mxu0 0.0
    %515 = vmatpush.msra.mxu0 0.0
    %516 = vmatpush.msra.mxu0 0.0
    %517 = vmatpush.msra.mxu0 0.0
    %518 = vmatpush.msra.mxu0 0.0
    %519 = vmatpush.msra.mxu0 0.0
    %520 = vmatpush.msra.mxu0 0.0
    %521 = vmatpush.msra.mxu0 %v100
    %522 = vmatpush.msra.mxu0 %v99
    %523 = vmatpush.msra.mxu0 %v98
    %524 = vmatpush.msra.mxu0 %v97
    %525 = vmatmul.f32.gmra.mxu0 %v462
    %v526 = vpop.f32.mrf.mxu0
    %v527 = vadd.f32 0.0, %v526
    %528 = vmatmul.f32.gmra.mxu0 %v465
    %v529 = vpop.f32.mrf.mxu0
    %v530 = vadd.f32 0.0, %v529
    %531 = vmatmul.f32.gmra.mxu0 %v468
    %v532 = vpop.f32.mrf.mxu0
    %v533 = vadd.f32 0.0, %v532
    %534 = vmatmul.f32.gmra.mxu0 %v471
    %v535 = vpop.f32.mrf.mxu0
    %v536 = vadd.f32 0.0, %v535
    %537 = vmatmul.f32.gmra.mxu0 %v474
    %v538 = vpop.f32.mrf.mxu0
    %v539 = vadd.f32 0.0, %v538
    %540 = vmatmul.f32.gmra.mxu0 %v477
    %v541 = vpop.f32.mrf.mxu0
    %v542 = vadd.f32 0.0, %v541
    %543 = vmatmul.f32.gmra.mxu0 %v480
    %v544 = vpop.f32.mrf.mxu0
    %v545 = vadd.f32 0.0, %v544
    %546 = vmatmul.f32.gmra.mxu0 %v483
    %v547 = vpop.f32.mrf.mxu0
    %v548 = vadd.f32 0.0, %v547
    %549 = vmatmul.f32.gmra.mxu0 %v486
    %v550 = vpop.f32.mrf.mxu0
    %v551 = vadd.f32 0.0, %v550
    %552 = vmatmul.f32.gmra.mxu0 %v489
    %v553 = vpop.f32.mrf.mxu0
    %v554 = vadd.f32 0.0, %v553
    %555 = vmatmul.f32.gmra.mxu0 %v492
    %v556 = vpop.f32.mrf.mxu0
    %v557 = vadd.f32 0.0, %v556
    %558 = vmatmul.f32.gmra.mxu0 %v495
    %v559 = vpop.f32.mrf.mxu0
    %v560 = vadd.f32 0.0, %v559
    %561 = vmatmul.f32.gmra.mxu0 %v498
    %v562 = vpop.f32.mrf.mxu0
    %v563 = vadd.f32 0.0, %v562
    %564 = vmatmul.f32.gmra.mxu0 %v501
    %v565 = vpop.f32.mrf.mxu0
    %v566 = vadd.f32 0.0, %v565
    %567 = vmatmul.f32.gmra.mxu0 %v504
    %v568 = vpop.f32.mrf.mxu0
    %v569 = vadd.f32 0.0, %v568
    %570 = vmatmul.f32.gmra.mxu0 %v507
    %v571 = vpop.f32.mrf.mxu0
    %v572 = vadd.f32 0.0, %v571
    %573 = vdwg.mxu0
    %v574 = vstv %s139
    %v575 = vmul.f32 %v574, %v444
    %v576 = vmul.f32 %v574, %v445
    %v577 = vmul.f32 %v574, %v446
    %v578 = vmul.f32 %v574, %v447
    %v579 = vmul.f32 %v574, %v448
    %v580 = vmul.f32 %v574, %v449
    %v581 = vmul.f32 %v574, %v450
    %v582 = vmul.f32 %v574, %v451
    %v583 = vmul.f32 %v574, %v452
    %v584 = vmul.f32 %v574, %v453
    %v585 = vmul.f32 %v574, %v454
    %v586 = vmul.f32 %v574, %v455
    %v587 = vmul.f32 %v574, %v456
    %v588 = vmul.f32 %v574, %v457
    %v589 = vmul.f32 %v574, %v458
    %v590 = vmul.f32 %v574, %v459
    %v591 = vstv %s140
    %v592 = vadd.f32 %v575, %v591
    %v593 = vadd.f32 %v576, %v591
    %v594 = vadd.f32 %v577, %v591
    %v595 = vadd.f32 %v578, %v591
    %v596 = vadd.f32 %v579, %v591
    %v597 = vadd.f32 %v580, %v591
    %v598 = vadd.f32 %v581, %v591
    %v599 = vadd.f32 %v582, %v591
    %v600 = vadd.f32 %v583, %v591
    %v601 = vadd.f32 %v584, %v591
    %v602 = vadd.f32 %v585, %v591
    %v603 = vadd.f32 %v586, %v591
    %v604 = vadd.f32 %v587, %v591
    %v605 = vadd.f32 %v588, %v591
    %v606 = vadd.f32 %v589, %v591
    %v607 = vadd.f32 %v590, %v591
    %v608 = vsub.f32 0.0, %v592
    %v609 = vsub.f32 0.0, %v593
    %v610 = vsub.f32 0.0, %v594
    %v611 = vsub.f32 0.0, %v595
    %v612 = vsub.f32 0.0, %v596
    %v613 = vsub.f32 0.0, %v597
    %v614 = vsub.f32 0.0, %v598
    %v615 = vsub.f32 0.0, %v599
    %v616 = vsub.f32 0.0, %v600
    %v617 = vsub.f32 0.0, %v601
    %v618 = vsub.f32 0.0, %v602
    %v619 = vsub.f32 0.0, %v603
    %v620 = vsub.f32 0.0, %v604
    %v621 = vsub.f32 0.0, %v605
    %v622 = vsub.f32 0.0, %v606
    %v623 = vsub.f32 0.0, %v607
    %v624 = vmul.f32 %v608, 1.442695
    %v625 = vpow.pop %v624
    %v626 = vmul.f32 %v609, 1.442695
    %v627 = vpow.pop %v626
    %v628 = vmul.f32 %v610, 1.442695
    %v629 = vpow.pop %v628
    %v630 = vmul.f32 %v611, 1.442695
    %v631 = vpow.pop %v630
    %v632 = vmul.f32 %v612, 1.442695
    %v633 = vpow.pop %v632
    %v634 = vmul.f32 %v613, 1.442695
    %v635 = vpow.pop %v634
    %v636 = vmul.f32 %v614, 1.442695
    %v637 = vpow.pop %v636
    %v638 = vmul.f32 %v615, 1.442695
    %v639 = vpow.pop %v638
    %v640 = vmul.f32 %v616, 1.442695
    %v641 = vpow.pop %v640
    %v642 = vmul.f32 %v617, 1.442695
    %v643 = vpow.pop %v642
    %v644 = vmul.f32 %v618, 1.442695
    %v645 = vpow.pop %v644
    %v646 = vmul.f32 %v619, 1.442695
    %v647 = vpow.pop %v646
    %v648 = vmul.f32 %v620, 1.442695
    %v649 = vpow.pop %v648
    %v650 = vmul.f32 %v621, 1.442695
    %v651 = vpow.pop %v650
    %v652 = vmul.f32 %v622, 1.442695
    %v653 = vpow.pop %v652
    %v654 = vmul.f32 %v623, 1.442695
    %v655 = vpow.pop %v654
    %v656 = vadd.f32 %v625, 1.0
    %v657 = vadd.f32 %v627, 1.0
    %v658 = vadd.f32 %v629, 1.0
    %v659 = vadd.f32 %v631, 1.0
    %v660 = vadd.f32 %v633, 1.0
    %v661 = vadd.f32 %v635, 1.0
    %v662 = vadd.f32 %v637, 1.0
    %v663 = vadd.f32 %v639, 1.0
    %v664 = vadd.f32 %v641, 1.0
    %v665 = vadd.f32 %v643, 1.0
    %v666 = vadd.f32 %v645, 1.0
    %v667 = vadd.f32 %v647, 1.0
    %v668 = vadd.f32 %v649, 1.0
    %v669 = vadd.f32 %v651, 1.0
    %v670 = vadd.f32 %v653, 1.0
    %v671 = vadd.f32 %v655, 1.0
    %v672 = vrcp.pop %v656
    %v673 = vrcp.pop %v657
    %v674 = vrcp.pop %v658
    %v675 = vrcp.pop %v659
    %v676 = vrcp.pop %v660
    %v677 = vrcp.pop %v661
    %v678 = vrcp.pop %v662
    %v679 = vrcp.pop %v663
    %v680 = vrcp.pop %v664
    %v681 = vrcp.pop %v665
    %v682 = vrcp.pop %v666
    %v683 = vrcp.pop %v667
    %v684 = vrcp.pop %v668
    %v685 = vrcp.pop %v669
    %v686 = vrcp.pop %v670
    %v687 = vrcp.pop %v671
    %v688 = vmul.f32 %v81, %v672
    %v689 = vmul.f32 %v82, %v673
    %v690 = vmul.f32 %v83, %v674
    %v691 = vmul.f32 %v84, %v675
    %v692 = vmul.f32 %v85, %v676
    %v693 = vmul.f32 %v86, %v677
    %v694 = vmul.f32 %v87, %v678
    %v695 = vmul.f32 %v88, %v679
    %v696 = vmul.f32 %v89, %v680
    %v697 = vmul.f32 %v90, %v681
    %v698 = vmul.f32 %v91, %v682
    %v699 = vmul.f32 %v92, %v683
    %v700 = vmul.f32 %v93, %v684
    %v701 = vmul.f32 %v94, %v685
    %v702 = vmul.f32 %v95, %v686
    %v703 = vmul.f32 %v96, %v687
    %v705 = vperm.slane %v101, 0
    %707 = vmatpush.msra.mxu0 %v572
    %708 = vmatpush.msra.mxu0 %v569
    %709 = vmatpush.msra.mxu0 %v566
    %710 = vmatpush.msra.mxu0 %v563
    %711 = vmatpush.msra.mxu0 %v560
    %712 = vmatpush.msra.mxu0 %v557
    %713 = vmatpush.msra.mxu0 %v554
    %714 = vmatpush.msra.mxu0 %v551
    %715 = vmatpush.msra.mxu0 %v548
    %716 = vmatpush.msra.mxu0 %v545
    %717 = vmatpush.msra.mxu0 %v542
    %718 = vmatpush.msra.mxu0 %v539
    %719 = vmatpush.msra.mxu0 %v536
    %720 = vmatpush.msra.mxu0 %v533
    %721 = vmatpush.msra.mxu0 %v530
    %722 = vmatpush.msra.mxu0 %v527
    %723 = vmatmul.f32.gmra.mxu0 %v688
    %v724 = vpop.f32.mrf.mxu0
    %v725 = vadd.f32 %v705, %v724
    %726 = vmatmul.f32.gmra.mxu0 %v689
    %v727 = vpop.f32.mrf.mxu0
    %v728 = vadd.f32 %v705, %v727
    %729 = vmatmul.f32.gmra.mxu0 %v690
    %v730 = vpop.f32.mrf.mxu0
    %v731 = vadd.f32 %v705, %v730
    %732 = vmatmul.f32.gmra.mxu0 %v691
    %v733 = vpop.f32.mrf.mxu0
    %v734 = vadd.f32 %v705, %v733
    %735 = vmatmul.f32.gmra.mxu0 %v692
    %v736 = vpop.f32.mrf.mxu0
    %v737 = vadd.f32 %v705, %v736
    %738 = vmatmul.f32.gmra.mxu0 %v693
    %v739 = vpop.f32.mrf.mxu0
    %v740 = vadd.f32 %v705, %v739
    %741 = vmatmul.f32.gmra.mxu0 %v694
    %v742 = vpop.f32.mrf.mxu0
    %v743 = vadd.f32 %v705, %v742
    %744 = vmatmul.f32.gmra.mxu0 %v695
    %v745 = vpop.f32.mrf.mxu0
    %v746 = vadd.f32 %v705, %v745
    %747 = vmatmul.f32.gmra.mxu0 %v696
    %v748 = vpop.f32.mrf.mxu0
    %v749 = vadd.f32 %v705, %v748
    %750 = vmatmul.f32.gmra.mxu0 %v697
    %v751 = vpop.f32.mrf.mxu0
    %v752 = vadd.f32 %v705, %v751
    %753 = vmatmul.f32.gmra.mxu0 %v698
    %v754 = vpop.f32.mrf.mxu0
    %v755 = vadd.f32 %v705, %v754
    %756 = vmatmul.f32.gmra.mxu0 %v699
    %v757 = vpop.f32.mrf.mxu0
    %v758 = vadd.f32 %v705, %v757
    %759 = vmatmul.f32.gmra.mxu0 %v700
    %v760 = vpop.f32.mrf.mxu0
    %v761 = vadd.f32 %v705, %v760
    %762 = vmatmul.f32.gmra.mxu0 %v701
    %v763 = vpop.f32.mrf.mxu0
    %v764 = vadd.f32 %v705, %v763
    %765 = vmatmul.f32.gmra.mxu0 %v702
    %v766 = vpop.f32.mrf.mxu0
    %v767 = vadd.f32 %v705, %v766
    %768 = vmatmul.f32.gmra.mxu0 %v703
    %v769 = vpop.f32.mrf.mxu0
    %v770 = vadd.f32 %v705, %v769
    %771 = vdwg.mxu0
    %v773 = vsel %vm460, %v725, 0
    %v776 = vsel %vm460, %v728, 0
    %v779 = vsel %vm460, %v731, 0
    %v782 = vsel %vm460, %v734, 0
    %v785 = vsel %vm460, %v737, 0
    %v788 = vsel %vm460, %v740, 0
    %v791 = vsel %vm460, %v743, 0
    %v794 = vsel %vm460, %v746, 0
    %v797 = vsel %vm460, %v749, 0
    %v800 = vsel %vm460, %v752, 0
    %v803 = vsel %vm460, %v755, 0
    %v806 = vsel %vm460, %v758, 0
    %v809 = vsel %vm460, %v761, 0
    %v812 = vsel %vm460, %v764, 0
    %v815 = vsel %vm460, %v767, 0
    %v818 = vsel %vm460, %v770, 0
    %820 = vmatpush.msra.mxu0 0.0
    %821 = vmatpush.msra.mxu0 0.0
    %822 = vmatpush.msra.mxu0 0.0
    %823 = vmatpush.msra.mxu0 0.0
    %824 = vmatpush.msra.mxu0 0.0
    %825 = vmatpush.msra.mxu0 0.0
    %826 = vmatpush.msra.mxu0 0.0
    %827 = vmatpush.msra.mxu0 0.0
    %828 = vmatpush.msra.mxu0 0.0
    %829 = vmatpush.msra.mxu0 0.0
    %830 = vmatpush.msra.mxu0 0.0
    %831 = vmatpush.msra.mxu0 0.0
    %832 = vmatpush.msra.mxu0 %v105
    %833 = vmatpush.msra.mxu0 %v104
    %834 = vmatpush.msra.mxu0 %v103
    %835 = vmatpush.msra.mxu0 %v102
    %836 = vmatmul.f32.gmra.mxu0 %v773
    %v837 = vpop.f32.mrf.mxu0
    %v838 = vadd.f32 0.0, %v837
    %839 = vmatmul.f32.gmra.mxu0 %v776
    %v840 = vpop.f32.mrf.mxu0
    %v841 = vadd.f32 0.0, %v840
    %842 = vmatmul.f32.gmra.mxu0 %v779
    %v843 = vpop.f32.mrf.mxu0
    %v844 = vadd.f32 0.0, %v843
    %845 = vmatmul.f32.gmra.mxu0 %v782
    %v846 = vpop.f32.mrf.mxu0
    %v847 = vadd.f32 0.0, %v846
    %848 = vmatmul.f32.gmra.mxu0 %v785
    %v849 = vpop.f32.mrf.mxu0
    %v850 = vadd.f32 0.0, %v849
    %851 = vmatmul.f32.gmra.mxu0 %v788
    %v852 = vpop.f32.mrf.mxu0
    %v853 = vadd.f32 0.0, %v852
    %854 = vmatmul.f32.gmra.mxu0 %v791
    %v855 = vpop.f32.mrf.mxu0
    %v856 = vadd.f32 0.0, %v855
    %857 = vmatmul.f32.gmra.mxu0 %v794
    %v858 = vpop.f32.mrf.mxu0
    %v859 = vadd.f32 0.0, %v858
    %860 = vmatmul.f32.gmra.mxu0 %v797
    %v861 = vpop.f32.mrf.mxu0
    %v862 = vadd.f32 0.0, %v861
    %863 = vmatmul.f32.gmra.mxu0 %v800
    %v864 = vpop.f32.mrf.mxu0
    %v865 = vadd.f32 0.0, %v864
    %866 = vmatmul.f32.gmra.mxu0 %v803
    %v867 = vpop.f32.mrf.mxu0
    %v868 = vadd.f32 0.0, %v867
    %869 = vmatmul.f32.gmra.mxu0 %v806
    %v870 = vpop.f32.mrf.mxu0
    %v871 = vadd.f32 0.0, %v870
    %872 = vmatmul.f32.gmra.mxu0 %v809
    %v873 = vpop.f32.mrf.mxu0
    %v874 = vadd.f32 0.0, %v873
    %875 = vmatmul.f32.gmra.mxu0 %v812
    %v876 = vpop.f32.mrf.mxu0
    %v877 = vadd.f32 0.0, %v876
    %878 = vmatmul.f32.gmra.mxu0 %v815
    %v879 = vpop.f32.mrf.mxu0
    %v880 = vadd.f32 0.0, %v879
    %881 = vmatmul.f32.gmra.mxu0 %v818
    %v882 = vpop.f32.mrf.mxu0
    %v883 = vadd.f32 0.0, %v882
    %884 = vdwg.mxu0
    %v885 = vstv %s141
    %v886 = vmul.f32 %v885, %v444
    %v887 = vmul.f32 %v885, %v445
    %v888 = vmul.f32 %v885, %v446
    %v889 = vmul.f32 %v885, %v447
    %v890 = vmul.f32 %v885, %v448
    %v891 = vmul.f32 %v885, %v449
    %v892 = vmul.f32 %v885, %v450
    %v893 = vmul.f32 %v885, %v451
    %v894 = vmul.f32 %v885, %v452
    %v895 = vmul.f32 %v885, %v453
    %v896 = vmul.f32 %v885, %v454
    %v897 = vmul.f32 %v885, %v455
    %v898 = vmul.f32 %v885, %v456
    %v899 = vmul.f32 %v885, %v457
    %v900 = vmul.f32 %v885, %v458
    %v901 = vmul.f32 %v885, %v459
    %v902 = vstv %s142
    %v903 = vadd.f32 %v886, %v902
    %v904 = vadd.f32 %v887, %v902
    %v905 = vadd.f32 %v888, %v902
    %v906 = vadd.f32 %v889, %v902
    %v907 = vadd.f32 %v890, %v902
    %v908 = vadd.f32 %v891, %v902
    %v909 = vadd.f32 %v892, %v902
    %v910 = vadd.f32 %v893, %v902
    %v911 = vadd.f32 %v894, %v902
    %v912 = vadd.f32 %v895, %v902
    %v913 = vadd.f32 %v896, %v902
    %v914 = vadd.f32 %v897, %v902
    %v915 = vadd.f32 %v898, %v902
    %v916 = vadd.f32 %v899, %v902
    %v917 = vadd.f32 %v900, %v902
    %v918 = vadd.f32 %v901, %v902
    %v919 = vsub.f32 0.0, %v903
    %v920 = vsub.f32 0.0, %v904
    %v921 = vsub.f32 0.0, %v905
    %v922 = vsub.f32 0.0, %v906
    %v923 = vsub.f32 0.0, %v907
    %v924 = vsub.f32 0.0, %v908
    %v925 = vsub.f32 0.0, %v909
    %v926 = vsub.f32 0.0, %v910
    %v927 = vsub.f32 0.0, %v911
    %v928 = vsub.f32 0.0, %v912
    %v929 = vsub.f32 0.0, %v913
    %v930 = vsub.f32 0.0, %v914
    %v931 = vsub.f32 0.0, %v915
    %v932 = vsub.f32 0.0, %v916
    %v933 = vsub.f32 0.0, %v917
    %v934 = vsub.f32 0.0, %v918
    %v935 = vmul.f32 %v919, 1.442695
    %v936 = vpow.pop %v935
    %v937 = vmul.f32 %v920, 1.442695
    %v938 = vpow.pop %v937
    %v939 = vmul.f32 %v921, 1.442695
    %v940 = vpow.pop %v939
    %v941 = vmul.f32 %v922, 1.442695
    %v942 = vpow.pop %v941
    %v943 = vmul.f32 %v923, 1.442695
    %v944 = vpow.pop %v943
    %v945 = vmul.f32 %v924, 1.442695
    %v946 = vpow.pop %v945
    %v947 = vmul.f32 %v925, 1.442695
    %v948 = vpow.pop %v947
    %v949 = vmul.f32 %v926, 1.442695
    %v950 = vpow.pop %v949
    %v951 = vmul.f32 %v927, 1.442695
    %v952 = vpow.pop %v951
    %v953 = vmul.f32 %v928, 1.442695
    %v954 = vpow.pop %v953
    %v955 = vmul.f32 %v929, 1.442695
    %v956 = vpow.pop %v955
    %v957 = vmul.f32 %v930, 1.442695
    %v958 = vpow.pop %v957
    %v959 = vmul.f32 %v931, 1.442695
    %v960 = vpow.pop %v959
    %v961 = vmul.f32 %v932, 1.442695
    %v962 = vpow.pop %v961
    %v963 = vmul.f32 %v933, 1.442695
    %v964 = vpow.pop %v963
    %v965 = vmul.f32 %v934, 1.442695
    %v966 = vpow.pop %v965
    %v967 = vadd.f32 %v936, 1.0
    %v968 = vadd.f32 %v938, 1.0
    %v969 = vadd.f32 %v940, 1.0
    %v970 = vadd.f32 %v942, 1.0
    %v971 = vadd.f32 %v944, 1.0
    %v972 = vadd.f32 %v946, 1.0
    %v973 = vadd.f32 %v948, 1.0
    %v974 = vadd.f32 %v950, 1.0
    %v975 = vadd.f32 %v952, 1.0
    %v976 = vadd.f32 %v954, 1.0
    %v977 = vadd.f32 %v956, 1.0
    %v978 = vadd.f32 %v958, 1.0
    %v979 = vadd.f32 %v960, 1.0
    %v980 = vadd.f32 %v962, 1.0
    %v981 = vadd.f32 %v964, 1.0
    %v982 = vadd.f32 %v966, 1.0
    %v983 = vrcp.pop %v967
    %v984 = vrcp.pop %v968
    %v985 = vrcp.pop %v969
    %v986 = vrcp.pop %v970
    %v987 = vrcp.pop %v971
    %v988 = vrcp.pop %v972
    %v989 = vrcp.pop %v973
    %v990 = vrcp.pop %v974
    %v991 = vrcp.pop %v975
    %v992 = vrcp.pop %v976
    %v993 = vrcp.pop %v977
    %v994 = vrcp.pop %v978
    %v995 = vrcp.pop %v979
    %v996 = vrcp.pop %v980
    %v997 = vrcp.pop %v981
    %v998 = vrcp.pop %v982
    %v999 = vmul.f32 %v81, %v983
    %v1000 = vmul.f32 %v82, %v984
    %v1001 = vmul.f32 %v83, %v985
    %v1002 = vmul.f32 %v84, %v986
    %v1003 = vmul.f32 %v85, %v987
    %v1004 = vmul.f32 %v86, %v988
    %v1005 = vmul.f32 %v87, %v989
    %v1006 = vmul.f32 %v88, %v990
    %v1007 = vmul.f32 %v89, %v991
    %v1008 = vmul.f32 %v90, %v992
    %v1009 = vmul.f32 %v91, %v993
    %v1010 = vmul.f32 %v92, %v994
    %v1011 = vmul.f32 %v93, %v995
    %v1012 = vmul.f32 %v94, %v996
    %v1013 = vmul.f32 %v95, %v997
    %v1014 = vmul.f32 %v96, %v998
    %v1016 = vperm.slane %v106, 0
    %1018 = vmatpush.msra.mxu0 %v883
    %1019 = vmatpush.msra.mxu0 %v880
    %1020 = vmatpush.msra.mxu0 %v877
    %1021 = vmatpush.msra.mxu0 %v874
    %1022 = vmatpush.msra.mxu0 %v871
    %1023 = vmatpush.msra.mxu0 %v868
    %1024 = vmatpush.msra.mxu0 %v865
    %1025 = vmatpush.msra.mxu0 %v862
    %1026 = vmatpush.msra.mxu0 %v859
    %1027 = vmatpush.msra.mxu0 %v856
    %1028 = vmatpush.msra.mxu0 %v853
    %1029 = vmatpush.msra.mxu0 %v850
    %1030 = vmatpush.msra.mxu0 %v847
    %1031 = vmatpush.msra.mxu0 %v844
    %1032 = vmatpush.msra.mxu0 %v841
    %1033 = vmatpush.msra.mxu0 %v838
    %1034 = vmatmul.f32.gmra.mxu0 %v999
    %v1035 = vpop.f32.mrf.mxu0
    %v1036 = vadd.f32 %v1016, %v1035
    %1037 = vmatmul.f32.gmra.mxu0 %v1000
    %v1038 = vpop.f32.mrf.mxu0
    %v1039 = vadd.f32 %v1016, %v1038
    %1040 = vmatmul.f32.gmra.mxu0 %v1001
    %v1041 = vpop.f32.mrf.mxu0
    %v1042 = vadd.f32 %v1016, %v1041
    %1043 = vmatmul.f32.gmra.mxu0 %v1002
    %v1044 = vpop.f32.mrf.mxu0
    %v1045 = vadd.f32 %v1016, %v1044
    %1046 = vmatmul.f32.gmra.mxu0 %v1003
    %v1047 = vpop.f32.mrf.mxu0
    %v1048 = vadd.f32 %v1016, %v1047
    %1049 = vmatmul.f32.gmra.mxu0 %v1004
    %v1050 = vpop.f32.mrf.mxu0
    %v1051 = vadd.f32 %v1016, %v1050
    %1052 = vmatmul.f32.gmra.mxu0 %v1005
    %v1053 = vpop.f32.mrf.mxu0
    %v1054 = vadd.f32 %v1016, %v1053
    %1055 = vmatmul.f32.gmra.mxu0 %v1006
    %v1056 = vpop.f32.mrf.mxu0
    %v1057 = vadd.f32 %v1016, %v1056
    %1058 = vmatmul.f32.gmra.mxu0 %v1007
    %v1059 = vpop.f32.mrf.mxu0
    %v1060 = vadd.f32 %v1016, %v1059
    %1061 = vmatmul.f32.gmra.mxu0 %v1008
    %v1062 = vpop.f32.mrf.mxu0
    %v1063 = vadd.f32 %v1016, %v1062
    %1064 = vmatmul.f32.gmra.mxu0 %v1009
    %v1065 = vpop.f32.mrf.mxu0
    %v1066 = vadd.f32 %v1016, %v1065
    %1067 = vmatmul.f32.gmra.mxu0 %v1010
    %v1068 = vpop.f32.mrf.mxu0
    %v1069 = vadd.f32 %v1016, %v1068
    %1070 = vmatmul.f32.gmra.mxu0 %v1011
    %v1071 = vpop.f32.mrf.mxu0
    %v1072 = vadd.f32 %v1016, %v1071
    %1073 = vmatmul.f32.gmra.mxu0 %v1012
    %v1074 = vpop.f32.mrf.mxu0
    %v1075 = vadd.f32 %v1016, %v1074
    %1076 = vmatmul.f32.gmra.mxu0 %v1013
    %v1077 = vpop.f32.mrf.mxu0
    %v1078 = vadd.f32 %v1016, %v1077
    %1079 = vmatmul.f32.gmra.mxu0 %v1014
    %v1080 = vpop.f32.mrf.mxu0
    %v1081 = vadd.f32 %v1016, %v1080
    %1082 = vdwg.mxu0
    %1083 = vxpose.xlu0.b32.start [1/16] %v1036, 128
    %1084 = vxpose.xlu0.b32.cont [2/16] %v1039, 128
    %1085 = vxpose.xlu0.b32.cont [3/16] %v1042, 128
    %1086 = vxpose.xlu0.b32.cont [4/16] %v1045, 128
    %1087 = vxpose.xlu0.b32.cont [5/16] %v1048, 128
    %1088 = vxpose.xlu0.b32.cont [6/16] %v1051, 128
    %1089 = vxpose.xlu0.b32.cont [7/16] %v1054, 128
    %1090 = vxpose.xlu0.b32.cont [8/16] %v1057, 128
    %1091 = vxpose.xlu0.b32.cont [9/16] %v1060, 128
    %1092 = vxpose.xlu0.b32.cont [10/16] %v1063, 128
    %1093 = vxpose.xlu0.b32.cont [11/16] %v1066, 128
    %1094 = vxpose.xlu0.b32.cont [12/16] %v1069, 128
    %1095 = vxpose.xlu0.b32.cont [13/16] %v1072, 128
    %1096 = vxpose.xlu0.b32.cont [14/16] %v1075, 128
    %1097 = vxpose.xlu0.b32.cont [15/16] %v1078, 128
    %1098 = vxpose.xlu0.b32.end [16/16] %v1081, 128
    %v1099 = vpop.trf.xlu0
    %v1100 = vpop.trf.xlu0
    %v1101 = vpop.trf.xlu0
    %v1102 = vpop.trf.xlu0
    %v1103 = vpop.trf.xlu0
    %v1104 = vpop.trf.xlu0
    %v1105 = vpop.trf.xlu0
    %v1106 = vpop.trf.xlu0
    %v1107 = vpop.trf.xlu0
    %v1108 = vpop.trf.xlu0
    %v1109 = vpop.trf.xlu0
    %v1110 = vpop.trf.xlu0
    %v1111 = vpop.trf.xlu0
    %v1112 = vpop.trf.xlu0
    %v1113 = vpop.trf.xlu0
    %v1114 = vpop.trf.xlu0
    %1115 = vmatpush.msra.mxu0 %v122
    %1116 = vmatpush.msra.mxu0 %v121
    %1117 = vmatpush.msra.mxu0 %v120
    %1118 = vmatpush.msra.mxu0 %v119
    %1119 = vmatpush.msra.mxu0 %v118
    %1120 = vmatpush.msra.mxu0 %v117
    %1121 = vmatpush.msra.mxu0 %v116
    %1122 = vmatpush.msra.mxu0 %v115
    %1123 = vmatpush.msra.mxu0 %v114
    %1124 = vmatpush.msra.mxu0 %v113
    %1125 = vmatpush.msra.mxu0 %v112
    %1126 = vmatpush.msra.mxu0 %v111
    %1127 = vmatpush.msra.mxu0 %v110
    %1128 = vmatpush.msra.mxu0 %v109
    %1129 = vmatpush.msra.mxu0 %v108
    %1130 = vmatpush.msra.mxu0 %v107
    %1131 = vmatmul.f32.gmra.mxu0 %v1099
    %v1132 = vpop.f32.mrf.mxu0
    %v1133 = vadd.f32 0.0, %v1132
    %1134 = vmatmul.f32.gmra.mxu0 %v1100
    %v1135 = vpop.f32.mrf.mxu0
    %v1136 = vadd.f32 0.0, %v1135
    %1137 = vmatmul.f32.gmra.mxu0 %v1101
    %v1138 = vpop.f32.mrf.mxu0
    %v1139 = vadd.f32 0.0, %v1138
    %1140 = vmatmul.f32.gmra.mxu0 %v1102
    %v1141 = vpop.f32.mrf.mxu0
    %v1142 = vadd.f32 0.0, %v1141
    %1143 = vmatmul.f32.gmra.mxu0 %v1103
    %v1144 = vpop.f32.mrf.mxu0
    %v1145 = vadd.f32 0.0, %v1144
    %1146 = vmatmul.f32.gmra.mxu0 %v1104
    %v1147 = vpop.f32.mrf.mxu0
    %v1148 = vadd.f32 0.0, %v1147
    %1149 = vmatmul.f32.gmra.mxu0 %v1105
    %v1150 = vpop.f32.mrf.mxu0
    %v1151 = vadd.f32 0.0, %v1150
    %1152 = vmatmul.f32.gmra.mxu0 %v1106
    %v1153 = vpop.f32.mrf.mxu0
    %v1154 = vadd.f32 0.0, %v1153
    %1155 = vmatmul.f32.gmra.mxu0 %v1107
    %v1156 = vpop.f32.mrf.mxu0
    %v1157 = vadd.f32 0.0, %v1156
    %1158 = vmatmul.f32.gmra.mxu0 %v1108
    %v1159 = vpop.f32.mrf.mxu0
    %v1160 = vadd.f32 0.0, %v1159
    %1161 = vmatmul.f32.gmra.mxu0 %v1109
    %v1162 = vpop.f32.mrf.mxu0
    %v1163 = vadd.f32 0.0, %v1162
    %1164 = vmatmul.f32.gmra.mxu0 %v1110
    %v1165 = vpop.f32.mrf.mxu0
    %v1166 = vadd.f32 0.0, %v1165
    %1167 = vmatmul.f32.gmra.mxu0 %v1111
    %v1168 = vpop.f32.mrf.mxu0
    %v1169 = vadd.f32 0.0, %v1168
    %1170 = vmatmul.f32.gmra.mxu0 %v1112
    %v1171 = vpop.f32.mrf.mxu0
    %v1172 = vadd.f32 0.0, %v1171
    %1173 = vmatmul.f32.gmra.mxu0 %v1113
    %v1174 = vpop.f32.mrf.mxu0
    %v1175 = vadd.f32 0.0, %v1174
    %1176 = vmatmul.f32.gmra.mxu0 %v1114
    %v1177 = vpop.f32.mrf.mxu0
    %v1178 = vadd.f32 0.0, %v1177
    %1179 = vdwg.mxu0
    %1180 = vmatpush.msra.mxu0 %v138
    %1181 = vmatpush.msra.mxu0 %v137
    %1182 = vmatpush.msra.mxu0 %v136
    %1183 = vmatpush.msra.mxu0 %v135
    %1184 = vmatpush.msra.mxu0 %v134
    %1185 = vmatpush.msra.mxu0 %v133
    %1186 = vmatpush.msra.mxu0 %v132
    %1187 = vmatpush.msra.mxu0 %v131
    %1188 = vmatpush.msra.mxu0 %v130
    %1189 = vmatpush.msra.mxu0 %v129
    %1190 = vmatpush.msra.mxu0 %v128
    %1191 = vmatpush.msra.mxu0 %v127
    %1192 = vmatpush.msra.mxu0 %v126
    %1193 = vmatpush.msra.mxu0 %v125
    %1194 = vmatpush.msra.mxu0 %v124
    %1195 = vmatpush.msra.mxu0 %v123
    %1196 = vmatmul.f32.gmra.mxu0 %v1099
    %v1197 = vpop.f32.mrf.mxu0
    %v1198 = vadd.f32 0.0, %v1197
    %1199 = vmatmul.f32.gmra.mxu0 %v1100
    %v1200 = vpop.f32.mrf.mxu0
    %v1201 = vadd.f32 0.0, %v1200
    %1202 = vmatmul.f32.gmra.mxu0 %v1101
    %v1203 = vpop.f32.mrf.mxu0
    %v1204 = vadd.f32 0.0, %v1203
    %1205 = vmatmul.f32.gmra.mxu0 %v1102
    %v1206 = vpop.f32.mrf.mxu0
    %v1207 = vadd.f32 0.0, %v1206
    %1208 = vmatmul.f32.gmra.mxu0 %v1103
    %v1209 = vpop.f32.mrf.mxu0
    %v1210 = vadd.f32 0.0, %v1209
    %1211 = vmatmul.f32.gmra.mxu0 %v1104
    %v1212 = vpop.f32.mrf.mxu0
    %v1213 = vadd.f32 0.0, %v1212
    %1214 = vmatmul.f32.gmra.mxu0 %v1105
    %v1215 = vpop.f32.mrf.mxu0
    %v1216 = vadd.f32 0.0, %v1215
    %1217 = vmatmul.f32.gmra.mxu0 %v1106
    %v1218 = vpop.f32.mrf.mxu0
    %v1219 = vadd.f32 0.0, %v1218
    %1220 = vmatmul.f32.gmra.mxu0 %v1107
    %v1221 = vpop.f32.mrf.mxu0
    %v1222 = vadd.f32 0.0, %v1221
    %1223 = vmatmul.f32.gmra.mxu0 %v1108
    %v1224 = vpop.f32.mrf.mxu0
    %v1225 = vadd.f32 0.0, %v1224
    %1226 = vmatmul.f32.gmra.mxu0 %v1109
    %v1227 = vpop.f32.mrf.mxu0
    %v1228 = vadd.f32 0.0, %v1227
    %1229 = vmatmul.f32.gmra.mxu0 %v1110
    %v1230 = vpop.f32.mrf.mxu0
    %v1231 = vadd.f32 0.0, %v1230
    %1232 = vmatmul.f32.gmra.mxu0 %v1111
    %v1233 = vpop.f32.mrf.mxu0
    %v1234 = vadd.f32 0.0, %v1233
    %1235 = vmatmul.f32.gmra.mxu0 %v1112
    %v1236 = vpop.f32.mrf.mxu0
    %v1237 = vadd.f32 0.0, %v1236
    %1238 = vmatmul.f32.gmra.mxu0 %v1113
    %v1239 = vpop.f32.mrf.mxu0
    %v1240 = vadd.f32 0.0, %v1239
    %1241 = vmatmul.f32.gmra.mxu0 %v1114
    %v1242 = vpop.f32.mrf.mxu0
    %v1243 = vadd.f32 0.0, %v1242
    %1244 = vdwg.mxu0
    %v1245 = vmul.f32 %v1133, %v1198
    %v1246 = vmul.f32 %v1136, %v1201
    %v1247 = vmul.f32 %v1139, %v1204
    %v1248 = vmul.f32 %v1142, %v1207
    %v1249 = vmul.f32 %v1145, %v1210
    %v1250 = vmul.f32 %v1148, %v1213
    %v1251 = vmul.f32 %v1151, %v1216
    %v1252 = vmul.f32 %v1154, %v1219
    %v1253 = vmul.f32 %v1157, %v1222
    %v1254 = vmul.f32 %v1160, %v1225
    %v1255 = vmul.f32 %v1163, %v1228
    %v1256 = vmul.f32 %v1166, %v1231
    %v1257 = vmul.f32 %v1169, %v1234
    %v1258 = vmul.f32 %v1172, %v1237
    %v1259 = vmul.f32 %v1175, %v1240
    %v1260 = vmul.f32 %v1178, %v1243
    %vm1261 = vcmask 130048
    %v1262 = vsel %vm1261, %v1245, 0.0
    %v1263 = vsel %vm1261, %v1246, 0.0
    %v1264 = vadd.f32 %v1262, %v1263
    %v1265 = vsel %vm1261, %v1247, 0.0
    %v1266 = vadd.f32 %v1264, %v1265
    %v1267 = vsel %vm1261, %v1248, 0.0
    %v1268 = vadd.f32 %v1266, %v1267
    %v1269 = vsel %vm1261, %v1249, 0.0
    %v1270 = vadd.f32 %v1268, %v1269
    %v1271 = vsel %vm1261, %v1250, 0.0
    %v1272 = vadd.f32 %v1270, %v1271
    %v1273 = vsel %vm1261, %v1251, 0.0
    %v1274 = vadd.f32 %v1272, %v1273
    %v1275 = vsel %vm1261, %v1252, 0.0
    %v1276 = vadd.f32 %v1274, %v1275
    %v1277 = vsel %vm1261, %v1253, 0.0
    %v1278 = vadd.f32 %v1276, %v1277
    %v1279 = vsel %vm1261, %v1254, 0.0
    %v1280 = vadd.f32 %v1278, %v1279
    %v1281 = vsel %vm1261, %v1255, 0.0
    %v1282 = vadd.f32 %v1280, %v1281
    %v1283 = vsel %vm1261, %v1256, 0.0
    %v1284 = vadd.f32 %v1282, %v1283
    %v1285 = vsel %vm1261, %v1257, 0.0
    %v1286 = vadd.f32 %v1284, %v1285
    %v1287 = vsel %vm1261, %v1258, 0.0
    %v1288 = vadd.f32 %v1286, %v1287
    %v1289 = vsel %vm1261, %v1259, 0.0
    %v1290 = vadd.f32 %v1288, %v1289
    %v1291 = vsel %vm1261, %v1260, 0.0
    %v1292 = vadd.f32 %v1290, %v1291
    %v1293 = vrot.slane %v1292, 4
    %v1294 = vadd.f32 %v1292, %v1293
    %v1295 = vrot.slane %v1294, 2
    %v1296 = vadd.f32 %v1294, %v1295
    %v1297 = vrot.slane %v1296, 1
    %v1298 = vadd.f32 %v1296, %v1297
    %1299 = vxpose.xlu0.b32.start [1/16] %v49, 128
    %1300 = vxpose.xlu0.b32.cont [2/16] %v50, 128
    %1301 = vxpose.xlu0.b32.cont [3/16] %v51, 128
    %1302 = vxpose.xlu0.b32.cont [4/16] %v52, 128
    %1303 = vxpose.xlu0.b32.cont [5/16] %v53, 128
    %1304 = vxpose.xlu0.b32.cont [6/16] %v54, 128
    %1305 = vxpose.xlu0.b32.cont [7/16] %v55, 128
    %1306 = vxpose.xlu0.b32.cont [8/16] %v56, 128
    %1307 = vxpose.xlu0.b32.cont [9/16] %v57, 128
    %1308 = vxpose.xlu0.b32.cont [10/16] %v58, 128
    %1309 = vxpose.xlu0.b32.cont [11/16] %v59, 128
    %1310 = vxpose.xlu0.b32.cont [12/16] %v60, 128
    %1311 = vxpose.xlu0.b32.cont [13/16] %v61, 128
    %1312 = vxpose.xlu0.b32.cont [14/16] %v62, 128
    %1313 = vxpose.xlu0.b32.cont [15/16] %v63, 128
    %1314 = vxpose.xlu0.b32.end [16/16] %v64, 128
    %v1315 = vpop.trf.xlu0
    %v1316 = vpop.trf.xlu0
    %v1317 = vpop.trf.xlu0
    %v1318 = vpop.trf.xlu0
    %v1319 = vpop.trf.xlu0
    %v1320 = vpop.trf.xlu0
    %v1321 = vpop.trf.xlu0
    %v1322 = vpop.trf.xlu0
    %v1323 = vpop.trf.xlu0
    %v1324 = vpop.trf.xlu0
    %v1325 = vpop.trf.xlu0
    %v1326 = vpop.trf.xlu0
    %v1327 = vpop.trf.xlu0
    %v1328 = vpop.trf.xlu0
    %v1329 = vpop.trf.xlu0
    %v1330 = vpop.trf.xlu0
    %1331 = vmatpush.msra.mxu0 %v122
    %1332 = vmatpush.msra.mxu0 %v121
    %1333 = vmatpush.msra.mxu0 %v120
    %1334 = vmatpush.msra.mxu0 %v119
    %1335 = vmatpush.msra.mxu0 %v118
    %1336 = vmatpush.msra.mxu0 %v117
    %1337 = vmatpush.msra.mxu0 %v116
    %1338 = vmatpush.msra.mxu0 %v115
    %1339 = vmatpush.msra.mxu0 %v114
    %1340 = vmatpush.msra.mxu0 %v113
    %1341 = vmatpush.msra.mxu0 %v112
    %1342 = vmatpush.msra.mxu0 %v111
    %1343 = vmatpush.msra.mxu0 %v110
    %1344 = vmatpush.msra.mxu0 %v109
    %1345 = vmatpush.msra.mxu0 %v108
    %1346 = vmatpush.msra.mxu0 %v107
    %1347 = vmatmul.f32.gmra.mxu0 %v1315
    %v1348 = vpop.f32.mrf.mxu0
    %v1349 = vadd.f32 0.0, %v1348
    %1350 = vdwg.mxu0
    %1351 = vmatpush.msra.mxu0 %v138
    %1352 = vmatpush.msra.mxu0 %v137
    %1353 = vmatpush.msra.mxu0 %v136
    %1354 = vmatpush.msra.mxu0 %v135
    %1355 = vmatpush.msra.mxu0 %v134
    %1356 = vmatpush.msra.mxu0 %v133
    %1357 = vmatpush.msra.mxu0 %v132
    %1358 = vmatpush.msra.mxu0 %v131
    %1359 = vmatpush.msra.mxu0 %v130
    %1360 = vmatpush.msra.mxu0 %v129
    %1361 = vmatpush.msra.mxu0 %v128
    %1362 = vmatpush.msra.mxu0 %v127
    %1363 = vmatpush.msra.mxu0 %v126
    %1364 = vmatpush.msra.mxu0 %v125
    %1365 = vmatpush.msra.mxu0 %v124
    %1366 = vmatpush.msra.mxu0 %v123
    %1367 = vmatmul.f32.gmra.mxu0 %v1315
    %v1368 = vpop.f32.mrf.mxu0
    %v1369 = vadd.f32 0.0, %v1368
    %1370 = vdwg.mxu0
    %v1371 = vsub.f32 %v1349, %v1369
    %v1372 = vmul.f32 %v1371, %v1371
    %v1373 = vsel %vm1261, %v1372, 0.0
    %v1374 = vrot.slane %v1373, 4
    %v1375 = vadd.f32 %v1373, %v1374
    %v1376 = vrot.slane %v1375, 2
    %v1377 = vadd.f32 %v1375, %v1376
    %v1378 = vrot.slane %v1377, 1
    %v1379 = vadd.f32 %v1377, %v1378
    %v1380 = vstv %s143
    %v1381 = vmul.f32 %v1298, %v1380
    %v1382 = vstv %s144
    %v1383 = vmul.f32 %v1379, %v1382
    %v1384 = vadd.f32 %v1381, %v1383
    %v1385 = vstv %s145
    %v1386 = vadd.f32 %v1384, %v1385
    %vm1387 = vcmask 122880
    %1388 = vst.msk [vmem:[#allocation5] sm:$0x1] %vm1387, %v1386
    // Predicated region
    $region46: #{net_forward.1} parent=1 // pred_check
      _
    $region47: #{net_forward.1} parent=1 // pred_check_branch
      %1390 = sbr.rel (0) target = $region49
    $region48: #{net_forward.1} parent=1 // pred_region
      %1392 = vsyncadd [#allocation3], 0
      %s1394 = sshll.u32 [#allocation5], 4
      %s1395 = int_to_ptr.vmem [resolvable:$true] %s1394
      %s1396 = sshll.u32 %s10, 4
      %s1397 = int_to_ptr.hbm [resolvable:$true] %s1396
      %1399 = dma.vmem_to_hbm [thread:$0]  %s1395, 16, %s1397, [#allocation3]
    $region49: #{net_forward.1} parent=1 // pred_fallthru
      _
    // Predicated region
    $region50: #{net_forward.1} parent=1 // pred_check
      _
    $region51: #{net_forward.1} parent=1 // pred_check_branch
      %1401 = sbr.rel (0) target = $region53
    $region52: #{net_forward.1} parent=1 // pred_region
      %1403 = dma.done [#allocation3], 16
    $region53: #{net_forward.1} parent=1 // pred_fallthru
      _
    %1404 = vsyncpa [#allocation3], 1
    %1405 = vsyncpa [#allocation4], 1

</llo_original>
